<compile_context>
chip_gen: v6e
topology: v6e:2x2x1
jax: 0.10.0
libtpu: 0.0.40
codegen_flags: <defaults>
</compile_context>

<pallas_src>
import functools

import jax
import jax.numpy as jnp
from jax.experimental import pallas as pl
from jax.experimental.pallas import tpu as pltpu

_LANE = 128


def _hybrid_conv_kernel(x_ref, w0_ref, w1_ref, o_ref, *,
                        cov, KH, KW, stride, TH, Wo, C, Co_pad):
    """One (image, Ho-band) grid step.

    x_ref : (1, H_in, W_in, C)   padded NHWC image (VMEM resident, DMA'd once per image)
    w*_ref: (KH, KW, C, Co_pad)  weight banks, output channels zero-padded to a lane multiple
    o_ref : (1, TH*Wo, Co_pad)   lane-dense output band
    """
    # Hybrid-kernel combine in f32 on the VPU, then cast operands to bf16 for the MXU.
    w = (w0_ref[...] + jnp.float32(cov) * w1_ref[...]).astype(jnp.bfloat16)

    hb = pl.program_id(1)
    row_step = TH * stride
    row0 = hb * row_step
    if row_step % 8 == 0:
        row0 = pl.multiple_of(row0, 8)

    acc = jnp.zeros((TH * Wo, Co_pad), jnp.float32)
    for kh in range(KH):               # static unrolled loops over the small kernel window
        for kw in range(KW):
            if stride == 1:
                sl = x_ref[0, pl.ds(row0 + kh, TH), pl.ds(kw, Wo), :]
            else:
                sl = x_ref[0, pl.ds(row0 + kh, TH, stride),
                           pl.ds(kw, Wo, stride), :]
            p = sl.reshape(TH * Wo, C).astype(jnp.bfloat16)
            acc = acc + jnp.dot(p, w[kh, kw],
                                preferred_element_type=jnp.float32)
    o_ref[...] = acc.reshape(1, TH * Wo, Co_pad).astype(o_ref.dtype)


def hybrid_conv2d(x, w0, w1, *, stride=1, padding=0, cov=0.0):
    """out = conv2d(x, w0 + cov*w1, stride, padding); x NCHW, weights OIHW -> NCHW out."""
    N, C, H, W = x.shape
    Co, Ci, KH, KW = w0.shape
    assert Ci == C and w1.shape == w0.shape
    Ho = (H + 2 * padding - KH) // stride + 1
    Wo = (W + 2 * padding - KW) // stride + 1
    assert Ho > 0 and Wo > 0

    Co_pad = pl.cdiv(Co, _LANE) * _LANE

    # Pick the output-row band height TH (rows of the per-step matmul M = TH*Wo).
    TARGET_ROWS = 1024
    if Ho * Wo <= 2 * TARGET_ROWS:
        TH = Ho                                   # single band per image
    else:
        TH = max(1, TARGET_ROWS // Wo)
        while (TH * Wo) % 8 != 0 and TH < Ho:     # keep the out block sublane-aligned
            TH += 1
        TH = min(TH, Ho)
    n_bands = pl.cdiv(Ho, TH)
    Ho_pad = n_bands * TH

    # NCHW -> NHWC (channels in the lane dim), conv zero padding + extra bottom rows
    # so every band's window stays in-bounds when Ho is padded up to a band multiple.
    x_nhwc = jnp.transpose(x, (0, 2, 3, 1))
    W_in = W + 2 * padding
    H_needed = (Ho_pad - 1) * stride + KH
    total_rows = max(H_needed, H + padding)
    pad_bottom = total_rows - (H + padding)
    xpad = jnp.pad(x_nhwc, ((0, 0), (padding, pad_bottom),
                            (padding, padding), (0, 0)))

    # Weights: OIHW -> (KH, KW, C, Co), zero-pad Co to a lane-dense multiple of 128.
    def _prep_w(wt):
        wt = jnp.transpose(wt, (2, 3, 1, 0))
        return jnp.pad(wt, ((0, 0), (0, 0), (0, 0), (0, Co_pad - Co)))
    w0f = _prep_w(w0)
    w1f = _prep_w(w1)

    # VMEM budget (double-buffered blocks) -> explicit limit (v7x has only 64 MiB/TC).
    in_tile = total_rows * W_in * C * 4
    w_tile = KH * KW * C * Co_pad * 4
    out_tile = TH * Wo * Co_pad * 4
    est = 2 * in_tile + 4 * w_tile + 2 * out_tile
    vmem_limit = int(min(max(2 * est, 16 * 1024 * 1024), 64 * 1024 * 1024))

    cost = pl.CostEstimate(
        flops=2 * N * Ho * Wo * C * KH * KW * Co,
        transcendentals=0,
        bytes_accessed=N * in_tile + 2 * w_tile + N * Ho_pad * Wo * Co_pad * 4,
    )

    kernel = functools.partial(
        _hybrid_conv_kernel, cov=float(cov), KH=KH, KW=KW, stride=stride,
        TH=TH, Wo=Wo, C=C, Co_pad=Co_pad)

    out = pl.pallas_call(
        kernel,
        out_shape=jax.ShapeDtypeStruct((N, Ho_pad * Wo, Co_pad), jnp.float32),
        grid=(N, n_bands),
        in_specs=[
            # whole padded image per batch element (block index constant over bands
            # -> DMA'd once per image), channels dense in the lane dim.
            pl.BlockSpec((1, total_rows, W_in, C), lambda n, hb: (n, 0, 0, 0)),
            # weights resident for the whole grid.
            pl.BlockSpec((KH, KW, C, Co_pad), lambda n, hb: (0, 0, 0, 0)),
            pl.BlockSpec((KH, KW, C, Co_pad), lambda n, hb: (0, 0, 0, 0)),
        ],
        out_specs=pl.BlockSpec((1, TH * Wo, Co_pad), lambda n, hb: (n, hb, 0)),
        compiler_params=pltpu.CompilerParams(
            dimension_semantics=("parallel", "arbitrary"),
            vmem_limit_bytes=vmem_limit),
        cost_estimate=cost,
    )(xpad, w0f, w1f)

    # (N, Ho_pad*Wo, Co_pad) -> NCHW (drop band / lane padding).
    # TODO(synk): consumers that accept NHWC could skip this final transpose pass.
    out = out.reshape(N, Ho_pad, Wo, Co_pad)[:, :Ho, :, :Co]
    return jnp.transpose(out, (0, 3, 1, 2))


if __name__ == "__main__":
    key = jax.random.PRNGKey(0)
    kx, k0, k1 = jax.random.split(key, 3)

    N, C, H, W = 2, 4, 16, 16
    Co, KH, KW = 8, 3, 3
    stride, padding, cov = 1, 1, 0.5

    x = jax.random.normal(kx, (N, C, H, W), dtype=jnp.float32)

    # kaiming_normal_(mode='fan_out', nonlinearity='relu'): std = sqrt(2 / fan_out)
    fan_out = Co * KH * KW
    std = (2.0 / fan_out) ** 0.5
    w0 = std * jax.random.normal(k0, (Co, C, KH, KW), dtype=jnp.float32)
    w1 = std * jax.random.normal(k1, (Co, C, KH, KW), dtype=jnp.float32)

    out = hybrid_conv2d(x, w0, w1, stride=stride, padding=padding, cov=cov)
    out = jax.block_until_ready(out)

    # reference: XLA conv with the combined kernel (full f32)
    kern = w0 + cov * w1
    ref = jax.lax.conv_general_dilated(
        x, kern, window_strides=(stride, stride),
        padding=[(padding, padding), (padding, padding)],
        dimension_numbers=("NCHW", "OIHW", "NCHW"))
    assert out.shape == ref.shape == (N, Co, H, W)
    # bf16 MXU operands (f32 accumulation) -> relaxed tolerance vs the f32 reference.
    err = float(jnp.max(jnp.abs(out - ref)))
    assert jnp.allclose(out, ref, atol=3e-2, rtol=3e-2), err

    print("KERNEL_OK")
</pallas_src>

<mosaic_0001>
module attributes {stable_mosaic.version = 11 : i64} {
  func.func @_hybrid_conv_kernel(%arg0: i32, %arg1: i32, %arg2: memref<1x18x18x4xf32, #tpu.memory_space<vmem>>, %arg3: memref<3x3x4x128xf32, #tpu.memory_space<vmem>>, %arg4: memref<3x3x4x128xf32, #tpu.memory_space<vmem>>, %arg5: memref<1x256x128xf32, #tpu.memory_space<vmem>>) attributes {dimension_semantics = [#tpu.dimension_semantics<parallel>, #tpu.dimension_semantics<arbitrary>], iteration_bounds = array<i64: 2, 1>, scalar_prefetch = 0 : i64, scratch_operands = 0 : i64, tpu.core_type = #tpu.core_type<tc>, window_params = [{transform_indices = @transform_0, window_bounds = array<i64: 1, 18, 18, 4>}, {pipeline_mode = #tpu.pipeline_mode<synchronous>, transform_indices = @transform_1, window_bounds = array<i64: 3, 3, 4, 128>}, {pipeline_mode = #tpu.pipeline_mode<synchronous>, transform_indices = @transform_2, window_bounds = array<i64: 3, 3, 4, 128>}, {transform_indices = @transform_3, window_bounds = array<i64: 1, 256, 128>}]} {
    %c0 = arith.constant 0 : index
    %c0_0 = arith.constant 0 : index
    %c0_1 = arith.constant 0 : index
    %c0_2 = arith.constant 0 : index
    %0 = vector.load %arg3[%c0, %c0_0, %c0_1, %c0_2] : memref<3x3x4x128xf32, #tpu.memory_space<vmem>>, vector<3x3x4x128xf32>
    %c0_3 = arith.constant 0 : index
    %c0_4 = arith.constant 0 : index
    %c0_5 = arith.constant 0 : index
    %c0_6 = arith.constant 0 : index
    %1 = vector.load %arg4[%c0_3, %c0_4, %c0_5, %c0_6] : memref<3x3x4x128xf32, #tpu.memory_space<vmem>>, vector<3x3x4x128xf32>
    %cst = arith.constant 5.000000e-01 : f32
    %2 = vector.broadcast %cst : f32 to vector<3x3x4x128xf32>
    %3 = arith.mulf %2, %1 : vector<3x3x4x128xf32>
    %4 = arith.addf %0, %3 : vector<3x3x4x128xf32>
    %5 = arith.truncf %4 : vector<3x3x4x128xf32> to vector<3x3x4x128xbf16>
    %c16_i32 = arith.constant 16 : i32
    %6 = arith.muli %arg1, %c16_i32 : i32
    %7 = tpu.assume_multiple %6, 8 : i32
    %cst_7 = arith.constant 0.000000e+00 : f32
    %8 = vector.broadcast %cst_7 : f32 to vector<256x128xf32>
    %c0_i32 = arith.constant 0 : i32
    %9 = arith.addi %7, %c0_i32 : i32
    %c0_8 = arith.constant 0 : index
    %10 = arith.index_cast %9 : i32 to index
    %c0_9 = arith.constant 0 : index
    %c0_10 = arith.constant 0 : index
    %11 = vector.load %arg2[%c0_8, %10, %c0_9, %c0_10] : memref<1x18x18x4xf32, #tpu.memory_space<vmem>>, vector<1x16x16x4xf32>
    %12 = vector.shape_cast %11 : vector<1x16x16x4xf32> to vector<16x16x4xf32>
    %13 = vector.shape_cast %12 : vector<16x16x4xf32> to vector<256x4xf32>
    %14 = arith.truncf %13 : vector<256x4xf32> to vector<256x4xbf16>
    %15 = vector.extract_strided_slice %5 {offsets = [0, 0, 0, 0], sizes = [1, 1, 4, 128], strides = [1, 1, 1, 1]} : vector<3x3x4x128xbf16> to vector<1x1x4x128xbf16>
    %16 = vector.shape_cast %15 : vector<1x1x4x128xbf16> to vector<4x128xbf16>
    %cst_11 = arith.constant dense<0.000000e+00> : vector<256x128xf32>
    %17 = tpu.matmul %14, %16, %cst_11 {dimension_numbers = #tpu.dot_dimension_numbers<[1], [0], [0], [1], [0, 0, 1, 1], [], []>} : vector<256x4xbf16>, vector<4x128xbf16>, vector<256x128xf32> -> vector<256x128xf32>
    %18 = arith.addf %8, %17 : vector<256x128xf32>
    %c0_i32_12 = arith.constant 0 : i32
    %19 = arith.addi %7, %c0_i32_12 : i32
    %c0_13 = arith.constant 0 : index
    %20 = arith.index_cast %19 : i32 to index
    %c1 = arith.constant 1 : index
    %c0_14 = arith.constant 0 : index
    %21 = vector.load %arg2[%c0_13, %20, %c1, %c0_14] : memref<1x18x18x4xf32, #tpu.memory_space<vmem>>, vector<1x16x16x4xf32>
    %22 = vector.shape_cast %21 : vector<1x16x16x4xf32> to vector<16x16x4xf32>
    %23 = vector.shape_cast %22 : vector<16x16x4xf32> to vector<256x4xf32>
    %24 = arith.truncf %23 : vector<256x4xf32> to vector<256x4xbf16>
    %25 = vector.extract_strided_slice %5 {offsets = [0, 1, 0, 0], sizes = [1, 1, 4, 128], strides = [1, 1, 1, 1]} : vector<3x3x4x128xbf16> to vector<1x1x4x128xbf16>
    %26 = vector.shape_cast %25 : vector<1x1x4x128xbf16> to vector<4x128xbf16>
    %cst_15 = arith.constant dense<0.000000e+00> : vector<256x128xf32>
    %27 = tpu.matmul %24, %26, %cst_15 {dimension_numbers = #tpu.dot_dimension_numbers<[1], [0], [0], [1], [0, 0, 1, 1], [], []>} : vector<256x4xbf16>, vector<4x128xbf16>, vector<256x128xf32> -> vector<256x128xf32>
    %28 = arith.addf %18, %27 : vector<256x128xf32>
    %c0_i32_16 = arith.constant 0 : i32
    %29 = arith.addi %7, %c0_i32_16 : i32
    %c0_17 = arith.constant 0 : index
    %30 = arith.index_cast %29 : i32 to index
    %c2 = arith.constant 2 : index
    %c0_18 = arith.constant 0 : index
    %31 = vector.load %arg2[%c0_17, %30, %c2, %c0_18] : memref<1x18x18x4xf32, #tpu.memory_space<vmem>>, vector<1x16x16x4xf32>
    %32 = vector.shape_cast %31 : vector<1x16x16x4xf32> to vector<16x16x4xf32>
    %33 = vector.shape_cast %32 : vector<16x16x4xf32> to vector<256x4xf32>
    %34 = arith.truncf %33 : vector<256x4xf32> to vector<256x4xbf16>
    %35 = vector.extract_strided_slice %5 {offsets = [0, 2, 0, 0], sizes = [1, 1, 4, 128], strides = [1, 1, 1, 1]} : vector<3x3x4x128xbf16> to vector<1x1x4x128xbf16>
    %36 = vector.shape_cast %35 : vector<1x1x4x128xbf16> to vector<4x128xbf16>
    %cst_19 = arith.constant dense<0.000000e+00> : vector<256x128xf32>
    %37 = tpu.matmul %34, %36, %cst_19 {dimension_numbers = #tpu.dot_dimension_numbers<[1], [0], [0], [1], [0, 0, 1, 1], [], []>} : vector<256x4xbf16>, vector<4x128xbf16>, vector<256x128xf32> -> vector<256x128xf32>
    %38 = arith.addf %28, %37 : vector<256x128xf32>
    %c1_i32 = arith.constant 1 : i32
    %39 = arith.addi %7, %c1_i32 : i32
    %c0_20 = arith.constant 0 : index
    %40 = arith.index_cast %39 : i32 to index
    %c0_21 = arith.constant 0 : index
    %c0_22 = arith.constant 0 : index
    %41 = vector.load %arg2[%c0_20, %40, %c0_21, %c0_22] : memref<1x18x18x4xf32, #tpu.memory_space<vmem>>, vector<1x16x16x4xf32>
    %42 = vector.shape_cast %41 : vector<1x16x16x4xf32> to vector<16x16x4xf32>
    %43 = vector.shape_cast %42 : vector<16x16x4xf32> to vector<256x4xf32>
    %44 = arith.truncf %43 : vector<256x4xf32> to vector<256x4xbf16>
    %45 = vector.extract_strided_slice %5 {offsets = [1, 0, 0, 0], sizes = [1, 1, 4, 128], strides = [1, 1, 1, 1]} : vector<3x3x4x128xbf16> to vector<1x1x4x128xbf16>
    %46 = vector.shape_cast %45 : vector<1x1x4x128xbf16> to vector<4x128xbf16>
    %cst_23 = arith.constant dense<0.000000e+00> : vector<256x128xf32>
    %47 = tpu.matmul %44, %46, %cst_23 {dimension_numbers = #tpu.dot_dimension_numbers<[1], [0], [0], [1], [0, 0, 1, 1], [], []>} : vector<256x4xbf16>, vector<4x128xbf16>, vector<256x128xf32> -> vector<256x128xf32>
    %48 = arith.addf %38, %47 : vector<256x128xf32>
    %c1_i32_24 = arith.constant 1 : i32
    %49 = arith.addi %7, %c1_i32_24 : i32
    %c0_25 = arith.constant 0 : index
    %50 = arith.index_cast %49 : i32 to index
    %c1_26 = arith.constant 1 : index
    %c0_27 = arith.constant 0 : index
    %51 = vector.load %arg2[%c0_25, %50, %c1_26, %c0_27] : memref<1x18x18x4xf32, #tpu.memory_space<vmem>>, vector<1x16x16x4xf32>
    %52 = vector.shape_cast %51 : vector<1x16x16x4xf32> to vector<16x16x4xf32>
    %53 = vector.shape_cast %52 : vector<16x16x4xf32> to vector<256x4xf32>
    %54 = arith.truncf %53 : vector<256x4xf32> to vector<256x4xbf16>
    %55 = vector.extract_strided_slice %5 {offsets = [1, 1, 0, 0], sizes = [1, 1, 4, 128], strides = [1, 1, 1, 1]} : vector<3x3x4x128xbf16> to vector<1x1x4x128xbf16>
    %56 = vector.shape_cast %55 : vector<1x1x4x128xbf16> to vector<4x128xbf16>
    %cst_28 = arith.constant dense<0.000000e+00> : vector<256x128xf32>
    %57 = tpu.matmul %54, %56, %cst_28 {dimension_numbers = #tpu.dot_dimension_numbers<[1], [0], [0], [1], [0, 0, 1, 1], [], []>} : vector<256x4xbf16>, vector<4x128xbf16>, vector<256x128xf32> -> vector<256x128xf32>
    %58 = arith.addf %48, %57 : vector<256x128xf32>
    %c1_i32_29 = arith.constant 1 : i32
    %59 = arith.addi %7, %c1_i32_29 : i32
    %c0_30 = arith.constant 0 : index
    %60 = arith.index_cast %59 : i32 to index
    %c2_31 = arith.constant 2 : index
    %c0_32 = arith.constant 0 : index
    %61 = vector.load %arg2[%c0_30, %60, %c2_31, %c0_32] : memref<1x18x18x4xf32, #tpu.memory_space<vmem>>, vector<1x16x16x4xf32>
    %62 = vector.shape_cast %61 : vector<1x16x16x4xf32> to vector<16x16x4xf32>
    %63 = vector.shape_cast %62 : vector<16x16x4xf32> to vector<256x4xf32>
    %64 = arith.truncf %63 : vector<256x4xf32> to vector<256x4xbf16>
    %65 = vector.extract_strided_slice %5 {offsets = [1, 2, 0, 0], sizes = [1, 1, 4, 128], strides = [1, 1, 1, 1]} : vector<3x3x4x128xbf16> to vector<1x1x4x128xbf16>
    %66 = vector.shape_cast %65 : vector<1x1x4x128xbf16> to vector<4x128xbf16>
    %cst_33 = arith.constant dense<0.000000e+00> : vector<256x128xf32>
    %67 = tpu.matmul %64, %66, %cst_33 {dimension_numbers = #tpu.dot_dimension_numbers<[1], [0], [0], [1], [0, 0, 1, 1], [], []>} : vector<256x4xbf16>, vector<4x128xbf16>, vector<256x128xf32> -> vector<256x128xf32>
    %68 = arith.addf %58, %67 : vector<256x128xf32>
    %c2_i32 = arith.constant 2 : i32
    %69 = arith.addi %7, %c2_i32 : i32
    %c0_34 = arith.constant 0 : index
    %70 = arith.index_cast %69 : i32 to index
    %c0_35 = arith.constant 0 : index
    %c0_36 = arith.constant 0 : index
    %71 = vector.load %arg2[%c0_34, %70, %c0_35, %c0_36] : memref<1x18x18x4xf32, #tpu.memory_space<vmem>>, vector<1x16x16x4xf32>
    %72 = vector.shape_cast %71 : vector<1x16x16x4xf32> to vector<16x16x4xf32>
    %73 = vector.shape_cast %72 : vector<16x16x4xf32> to vector<256x4xf32>
    %74 = arith.truncf %73 : vector<256x4xf32> to vector<256x4xbf16>
    %75 = vector.extract_strided_slice %5 {offsets = [2, 0, 0, 0], sizes = [1, 1, 4, 128], strides = [1, 1, 1, 1]} : vector<3x3x4x128xbf16> to vector<1x1x4x128xbf16>
    %76 = vector.shape_cast %75 : vector<1x1x4x128xbf16> to vector<4x128xbf16>
    %cst_37 = arith.constant dense<0.000000e+00> : vector<256x128xf32>
    %77 = tpu.matmul %74, %76, %cst_37 {dimension_numbers = #tpu.dot_dimension_numbers<[1], [0], [0], [1], [0, 0, 1, 1], [], []>} : vector<256x4xbf16>, vector<4x128xbf16>, vector<256x128xf32> -> vector<256x128xf32>
    %78 = arith.addf %68, %77 : vector<256x128xf32>
    %c2_i32_38 = arith.constant 2 : i32
    %79 = arith.addi %7, %c2_i32_38 : i32
    %c0_39 = arith.constant 0 : index
    %80 = arith.index_cast %79 : i32 to index
    %c1_40 = arith.constant 1 : index
    %c0_41 = arith.constant 0 : index
    %81 = vector.load %arg2[%c0_39, %80, %c1_40, %c0_41] : memref<1x18x18x4xf32, #tpu.memory_space<vmem>>, vector<1x16x16x4xf32>
    %82 = vector.shape_cast %81 : vector<1x16x16x4xf32> to vector<16x16x4xf32>
    %83 = vector.shape_cast %82 : vector<16x16x4xf32> to vector<256x4xf32>
    %84 = arith.truncf %83 : vector<256x4xf32> to vector<256x4xbf16>
    %85 = vector.extract_strided_slice %5 {offsets = [2, 1, 0, 0], sizes = [1, 1, 4, 128], strides = [1, 1, 1, 1]} : vector<3x3x4x128xbf16> to vector<1x1x4x128xbf16>
    %86 = vector.shape_cast %85 : vector<1x1x4x128xbf16> to vector<4x128xbf16>
    %cst_42 = arith.constant dense<0.000000e+00> : vector<256x128xf32>
    %87 = tpu.matmul %84, %86, %cst_42 {dimension_numbers = #tpu.dot_dimension_numbers<[1], [0], [0], [1], [0, 0, 1, 1], [], []>} : vector<256x4xbf16>, vector<4x128xbf16>, vector<256x128xf32> -> vector<256x128xf32>
    %88 = arith.addf %78, %87 : vector<256x128xf32>
    %c2_i32_43 = arith.constant 2 : i32
    %89 = arith.addi %7, %c2_i32_43 : i32
    %c0_44 = arith.constant 0 : index
    %90 = arith.index_cast %89 : i32 to index
    %c2_45 = arith.constant 2 : index
    %c0_46 = arith.constant 0 : index
    %91 = vector.load %arg2[%c0_44, %90, %c2_45, %c0_46] : memref<1x18x18x4xf32, #tpu.memory_space<vmem>>, vector<1x16x16x4xf32>
    %92 = vector.shape_cast %91 : vector<1x16x16x4xf32> to vector<16x16x4xf32>
    %93 = vector.shape_cast %92 : vector<16x16x4xf32> to vector<256x4xf32>
    %94 = arith.truncf %93 : vector<256x4xf32> to vector<256x4xbf16>
    %95 = vector.extract_strided_slice %5 {offsets = [2, 2, 0, 0], sizes = [1, 1, 4, 128], strides = [1, 1, 1, 1]} : vector<3x3x4x128xbf16> to vector<1x1x4x128xbf16>
    %96 = vector.shape_cast %95 : vector<1x1x4x128xbf16> to vector<4x128xbf16>
    %cst_47 = arith.constant dense<0.000000e+00> : vector<256x128xf32>
    %97 = tpu.matmul %94, %96, %cst_47 {dimension_numbers = #tpu.dot_dimension_numbers<[1], [0], [0], [1], [0, 0, 1, 1], [], []>} : vector<256x4xbf16>, vector<4x128xbf16>, vector<256x128xf32> -> vector<256x128xf32>
    %98 = arith.addf %88, %97 : vector<256x128xf32>
    %99 = vector.shape_cast %98 : vector<256x128xf32> to vector<1x256x128xf32>
    %c0_48 = arith.constant 0 : index
    %c0_49 = arith.constant 0 : index
    %c0_50 = arith.constant 0 : index
    %100 = vector.load %arg5[%c0_48, %c0_49, %c0_50] : memref<1x256x128xf32, #tpu.memory_space<vmem>>, vector<1x256x128xf32>
    tpu.vector_store %arg5[%c0_48, %c0_49, %c0_50], %99 {strides = array<i32>} : memref<1x256x128xf32, #tpu.memory_space<vmem>>, vector<1x256x128xf32>,
    return
  }
  func.func @transform_0(%arg0: i32, %arg1: i32) -> (i32, i32, i32, i32) {
    %c0_i32 = arith.constant 0 : i32
    %c0_i32_0 = arith.constant 0 : i32
    %c0_i32_1 = arith.constant 0 : i32
    %c0_i32_2 = arith.constant 0 : i32
    return %arg0, %c0_i32, %c0_i32_0, %c0_i32_1 : i32, i32, i32, i32
  }
  func.func @transform_1(%arg0: i32, %arg1: i32) -> (i32, i32, i32, i32) {
    %c0_i32 = arith.constant 0 : i32
    %c0_i32_0 = arith.constant 0 : i32
    %c0_i32_1 = arith.constant 0 : i32
    %c0_i32_2 = arith.constant 0 : i32
    %c0_i32_3 = arith.constant 0 : i32
    return %c0_i32, %c0_i32_0, %c0_i32_1, %c0_i32_2 : i32, i32, i32, i32
  }
  func.func @transform_2(%arg0: i32, %arg1: i32) -> (i32, i32, i32, i32) {
    %c0_i32 = arith.constant 0 : i32
    %c0_i32_0 = arith.constant 0 : i32
    %c0_i32_1 = arith.constant 0 : i32
    %c0_i32_2 = arith.constant 0 : i32
    %c0_i32_3 = arith.constant 0 : i32
    return %c0_i32, %c0_i32_0, %c0_i32_1, %c0_i32_2 : i32, i32, i32, i32
  }
  func.func @transform_3(%arg0: i32, %arg1: i32) -> (i32, i32, i32) {
    %c0_i32 = arith.constant 0 : i32
    %c0_i32_0 = arith.constant 0 : i32
    return %arg0, %arg1, %c0_i32 : i32, i32, i32
  }
}

</mosaic_0001>

<llo_original>
// kernel: tpu_custom_call.1
$region0: #{tpu_custom_call.1}
  #allocation0 [shape = 'u32[]', space=smem, size = 0x4, offset = 0x4, fixed_abs, tag = 'smem constant byte address 0x4 - core index']
  #allocation1 [shape = 'u32[144,128]{1,0:T(1,128)}', space=vmem, size = 0x12000, scoped, tag = 'internal scratch']
  %s0 = inlined_call_operand.vmem [shape: f32[2,18,18,4], index: 0, kind: input, shape index: {}]
  %s1 = inlined_call_operand.vmem [shape: f32[3,3,4,128], index: 1, kind: input, shape index: {}]
  %s2 = inlined_call_operand.vmem [shape: f32[3,3,4,128], index: 2, kind: input, shape index: {}]
  %s3 = inlined_call_operand.hbm [shape: f32[2,256,128], index: 3, kind: output, shape index: {}]
  %s4 = sld [smem:[#allocation0]]
  $region45: #{tpu_custom_call.1} parent=0
    _
  %s6 = ssub.s32 1, %s4
  %s7 = scalar_select 0, %s6, %s4
  $region1: #{tpu_custom_call.1} parent=0
    #allocation2 [shape = 'u8[262144]{0}', space=vmem, size = 0x40000, scoped, tag = 'output window, operand 0']
    #allocation3 [shape = 's32[2]{0}', space=sflag, size = 0x8, scoped, tag = 'scoped memory for tpu_custom_call.1']
    %8 = vsyncpa [#allocation3], 0
    %s9 = scalar_lea.sflag [#allocation3], 1
    %10 = vsyncpa %s9, 0
    loop: start=0, step=1, limit=4
    $region2: #{tpu_custom_call.1} parent=1 // loop_pre_header
      _
    $region3: #{tpu_custom_call.1} parent=1 // loop_header
      %s12 = sphi 0, %s16
      %p13 = scmp.ge.s32.totalorder %s12, 4
      %s19 = sphi 0, %s31
      %s20 = sphi 0, %s27
      %s21 = sphi 0, %s19
      %s22 = sphi 0, %s20
      %s23 = sphi 0, %s21
      %s24 = sphi 0, %s22
      %s34 = sphi 0, %s36
      %s37 = sphi 0, %s34
      %s38 = sphi 0, %s37
      %s54 = sphi 0, %s38
      %s58 = sphi 0, %s58
      %s60 = sphi 0, %s58
      %s61 = sphi 0, %s60
      %s75 = sphi 0, %s61
      %s79 = sphi 0, %s79
      %s81 = sphi 0, %s79
      %s82 = sphi 0, %s81
      %s96 = sphi 0, %s82
      %s104 = sphi 0, %s106
      %s107 = sphi 0, %s104
      %s108 = sphi 0, %s107
      %s124 = sphi 0, %s108
    $region4: #{tpu_custom_call.1} parent=1 // loop_header_branch
      %15 = sbr.rel (%p13) target = $region8
    $region5: #{tpu_custom_call.1} parent=1 // loop_body
      %s17 = ssub.s32 %s12, 1
      %s18 = ssub.s32 %s12, 2
      %s25 = sadd.s32 1, %s20
      %p26 = scmp.ge.s32.totalorder %s25, 1
      %s27 = scalar_select %p26, 0, %s25
      %s28 = sadd.s32 1, %s19
      %s29 = scalar_select %p26, %s28, %s19
      %p30 = scmp.ge.s32.totalorder %s29, 2
      %s31 = scalar_select %p30, 0, %s29
      %s32 = ssub.s32 %s19, %s31
      %p33 = scmp.eq.s32.totalorder %s32, 0
      %s35 = sadd.s32 %s34, 1
      %s36 = scalar_select %p33, %s34, %s35
      %p39 = pneg %p33
      %p40 = scmp.eq.s32.totalorder %s12, 1
      %p41 = por %p39, %p40
      %p42 = scmp.ne.s32.totalorder %s34, %s37
      %p43 = scmp.eq.s32.totalorder %s12, 0
      %p44 = por %p42, %p43
      %p45 = scmp.ne.s32.totalorder %s34, %s37
      %p46 = scmp.eq.s32.totalorder %s17, 1
      %p47 = por %p45, %p46
      %p48 = scmp.ne.s32.totalorder %s37, %s38
      %p49 = scmp.eq.s32.totalorder %s17, 0
      %p50 = por %p48, %p49
      %p51 = scmp.ne.s32.totalorder %s37, %s38
      %p52 = scmp.eq.s32.totalorder %s18, 1
      %p53 = por %p51, %p52
      %p55 = scmp.ne.s32.totalorder %s38, %s54
      %p56 = scmp.eq.s32.totalorder %s18, 0
      %p57 = por %p55, %p56
      %s59 = sadd.s32 %s58, 1
      %p62 = scmp.eq.s32.totalorder %s12, 1
      %p63 = scmp.ne.s32.totalorder %s58, %s60
      %p64 = scmp.eq.s32.totalorder %s12, 0
      %p65 = por %p63, %p64
      %p66 = scmp.ne.s32.totalorder %s58, %s60
      %p67 = scmp.eq.s32.totalorder %s17, 1
      %p68 = por %p66, %p67
      %p69 = scmp.ne.s32.totalorder %s60, %s61
      %p70 = scmp.eq.s32.totalorder %s17, 0
      %p71 = por %p69, %p70
      %p72 = scmp.ne.s32.totalorder %s60, %s61
      %p73 = scmp.eq.s32.totalorder %s18, 1
      %p74 = por %p72, %p73
      %p76 = scmp.ne.s32.totalorder %s61, %s75
      %p77 = scmp.eq.s32.totalorder %s18, 0
      %p78 = por %p76, %p77
      %s80 = sadd.s32 %s79, 1
      %p83 = scmp.eq.s32.totalorder %s12, 1
      %p84 = scmp.ne.s32.totalorder %s79, %s81
      %p85 = scmp.eq.s32.totalorder %s12, 0
      %p86 = por %p84, %p85
      %p87 = scmp.ne.s32.totalorder %s79, %s81
      %p88 = scmp.eq.s32.totalorder %s17, 1
      %p89 = por %p87, %p88
      %p90 = scmp.ne.s32.totalorder %s81, %s82
      %p91 = scmp.eq.s32.totalorder %s17, 0
      %p92 = por %p90, %p91
      %p93 = scmp.ne.s32.totalorder %s81, %s82
      %p94 = scmp.eq.s32.totalorder %s18, 1
      %p95 = por %p93, %p94
      %p97 = scmp.ne.s32.totalorder %s82, %s96
      %p98 = scmp.eq.s32.totalorder %s18, 0
      %p99 = por %p97, %p98
      %s100 = ssub.s32 %s19, %s31
      %s101 = ssub.s32 %s20, %s27
      %s102 = sor.u32 %s100, %s101
      %p103 = scmp.eq.s32.totalorder %s102, 0
      %s105 = sadd.s32 %s104, 1
      %s106 = scalar_select %p103, %s104, %s105
      %p109 = pneg %p103
      %p110 = scmp.eq.s32.totalorder %s12, 1
      %p111 = por %p109, %p110
      %p112 = scmp.ne.s32.totalorder %s104, %s107
      %p113 = scmp.eq.s32.totalorder %s12, 0
      %p114 = por %p112, %p113
      %p115 = scmp.ne.s32.totalorder %s104, %s107
      %p116 = scmp.eq.s32.totalorder %s17, 1
      %p117 = por %p115, %p116
      %p118 = scmp.ne.s32.totalorder %s107, %s108
      %p119 = scmp.eq.s32.totalorder %s17, 0
      %p120 = por %p118, %p119
      %p121 = scmp.ne.s32.totalorder %s107, %s108
      %p122 = scmp.eq.s32.totalorder %s18, 1
      %p123 = por %p121, %p122
      %p125 = scmp.ne.s32.totalorder %s108, %s124
      %p126 = scmp.eq.s32.totalorder %s18, 0
      %p127 = por %p125, %p126
      %p128 = scmp.le.s32.totalorder 1, %s12
      %p129 = scmp.lt.s32.totalorder %s12, 3
      %p130 = pnand %p128, %p129
      %p131 = pneg %p130
      // Predicated region
      $region9: #{tpu_custom_call.1} parent=5 // pred_check
        _
      $region10: #{tpu_custom_call.1} parent=5 // pred_check_branch
        %133 = sbr.rel (%p130) target = $region12
      $region11: #{tpu_custom_call.1} parent=5 // pred_region
        %s134 = ssub.s32 %s12, 1
        // Predicated region
        $region13: #{tpu_custom_call.1} parent=11 // pred_check
          %p135 = pneg %p71
        $region14: #{tpu_custom_call.1} parent=11 // pred_check_branch
          %137 = sbr.rel (%p135) target = $region16
        $region15: #{tpu_custom_call.1} parent=11 // pred_region
          _
        $region16: #{tpu_custom_call.1} parent=11 // pred_fallthru
          _
        // Predicated region
        $region17: #{tpu_custom_call.1} parent=11 // pred_check
          %p138 = pneg %p92
        $region18: #{tpu_custom_call.1} parent=11 // pred_check_branch
          %140 = sbr.rel (%p138) target = $region20
        $region19: #{tpu_custom_call.1} parent=11 // pred_region
          _
        $region20: #{tpu_custom_call.1} parent=11 // pred_fallthru
          _
      $region12: #{tpu_custom_call.1} parent=5 // pred_fallthru
        _
      %p141 = scmp.lt.s32.totalorder %s12, 2
      // Predicated region
      $region21: #{tpu_custom_call.1} parent=5 // pred_check
        %p142 = pneg %p141
      $region22: #{tpu_custom_call.1} parent=5 // pred_check_branch
        %144 = sbr.rel (%p142) target = $region24
      $region23: #{tpu_custom_call.1} parent=5 // pred_region
        // Predicated region
        $region25: #{tpu_custom_call.1} parent=23 // pred_check
          %p145 = pneg %p44
        $region26: #{tpu_custom_call.1} parent=23 // pred_check_branch
          %147 = sbr.rel (%p145) target = $region28
        $region27: #{tpu_custom_call.1} parent=23 // pred_region
          %p148 = scmp.lt.s32.totalorder %s19, 1
          %s149 = scalar_select %p148, %s19, 1
          %s150 = smul.addr %s149, 54
          %s151 = smul.addr %s150, 8
          %s152 = scalar_lea.vmem %s0, %s151
        $region28: #{tpu_custom_call.1} parent=23 // pred_fallthru
          _
      $region24: #{tpu_custom_call.1} parent=5 // pred_fallthru
        _
      %p153 = scmp.le.s32.totalorder 1, %s12
      %p154 = scmp.lt.s32.totalorder %s12, 3
      %p155 = pnand %p153, %p154
      %p156 = pneg %p155
      // Predicated region
      $region29: #{tpu_custom_call.1} parent=5 // pred_check
        _
      $region30: #{tpu_custom_call.1} parent=5 // pred_check_branch
        %158 = sbr.rel (%p155) target = $region32
      $region31: #{tpu_custom_call.1} parent=5 // pred_region
        %s159 = ssub.s32 %s12, 1
        %p160 = scmp.lt.s32.totalorder %s21, 1
        %s161 = scalar_select %p160, %s21, 1
        %s162 = smul.addr %s161, 54
        %s163 = smul.addr %s162, 8
        %s164 = scalar_lea.vmem %s0, %s163
        %p165 = pneg %p50
        %p166 = pneg %p47
        %p167 = pneg %p71
        %p168 = pneg %p68
        %p169 = pneg %p92
        %p170 = pneg %p89
        %p171 = pneg %p120
        %p172 = pneg %p117
        %s173 = sand.u32 %s107, 1
        %s174 = scalar_lea.sflag [#allocation3], %s173
        %s175 = sand.u32 %s107, 1
        %s176 = smul.addr %s175, 256
        %s177 = scalar_lea.vmem [#allocation2], %s176
        %p178 = scmp.lt.s32.totalorder %s21, 1
        %s179 = scalar_select %p178, %s21, 1
        %s180 = smul.addr %s179, 54
        %s181 = smul.addr %s180, 8
        %s182 = scalar_lea.vmem %s0, %s181
        %s183 = smul.u32 32, %s22
        %v185 = vld [vmem:[%s1] sm:$0xf]
        %v186 = vld [vmem:[%s1 + $0x4] sm:$0xf]
        %v187 = vld [vmem:[%s1 + $0x8] sm:$0xf]
        %v188 = vld [vmem:[%s1 + $0xc] sm:$0xf]
        %v189 = vld [vmem:[%s1 + $0x10] sm:$0xf]
        %v190 = vld [vmem:[%s1 + $0x14] sm:$0xf]
        %v191 = vld [vmem:[%s1 + $0x18] sm:$0xf]
        %v192 = vld [vmem:[%s1 + $0x1c] sm:$0xf]
        %v193 = vld [vmem:[%s1 + $0x20] sm:$0xf]
        %v194 = vld [vmem:[%s2] sm:$0xf]
        %v195 = vld [vmem:[%s2 + $0x4] sm:$0xf]
        %v196 = vld [vmem:[%s2 + $0x8] sm:$0xf]
        %v197 = vld [vmem:[%s2 + $0xc] sm:$0xf]
        %v198 = vld [vmem:[%s2 + $0x10] sm:$0xf]
        %v199 = vld [vmem:[%s2 + $0x14] sm:$0xf]
        %v200 = vld [vmem:[%s2 + $0x18] sm:$0xf]
        %v201 = vld [vmem:[%s2 + $0x1c] sm:$0xf]
        %v202 = vld [vmem:[%s2 + $0x20] sm:$0xf]
        %v203 = vmul.f32 %v194, 0.5
        %v204 = vmul.f32 %v195, 0.5
        %v205 = vmul.f32 %v196, 0.5
        %v206 = vmul.f32 %v197, 0.5
        %v207 = vmul.f32 %v198, 0.5
        %v208 = vmul.f32 %v199, 0.5
        %v209 = vmul.f32 %v200, 0.5
        %v210 = vmul.f32 %v201, 0.5
        %v211 = vmul.f32 %v202, 0.5
        %v212 = vadd.f32 %v185, %v203
        %v213 = vadd.f32 %v186, %v204
        %v214 = vadd.f32 %v187, %v205
        %v215 = vadd.f32 %v188, %v206
        %v216 = vadd.f32 %v189, %v207
        %v217 = vadd.f32 %v190, %v208
        %v218 = vadd.f32 %v191, %v209
        %v219 = vadd.f32 %v192, %v210
        %v220 = vadd.f32 %v193, %v211
        %v221 = vpack.c.bf16 %v212, %v212
        %v222 = vpack.c.bf16 %v213, %v213
        %v223 = vpack.c.bf16 %v214, %v214
        %v224 = vpack.c.bf16 %v215, %v215
        %v225 = vpack.c.bf16 %v216, %v216
        %v226 = vpack.c.bf16 %v217, %v217
        %v227 = vpack.c.bf16 %v218, %v218
        %v228 = vpack.c.bf16 %v219, %v219
        %v229 = vpack.c.bf16 %v220, %v220
        %s230 = smul.u32 %s22, 16
        %s231 = smul.u32 %s230, 24
        %s232 = scalar_lea.vmem %s182, %s231
        %v233 = vld [vmem:[%s232] sm:$0xff]
        %v234 = vld [vmem:[%s232 + $0x8] sm:$0xff]
        %v235 = vld [vmem:[%s232 + $0x18] sm:$0xff]
        %v236 = vld [vmem:[%s232 + $0x20] sm:$0xff]
        %v237 = vld [vmem:[%s232 + $0x30] sm:$0xff]
        %v238 = vld [vmem:[%s232 + $0x38] sm:$0xff]
        %v239 = vld [vmem:[%s232 + $0x48] sm:$0xff]
        %v240 = vld [vmem:[%s232 + $0x50] sm:$0xff]
        %v241 = vld [vmem:[%s232 + $0x60] sm:$0xff]
        %v242 = vld [vmem:[%s232 + $0x68] sm:$0xff]
        %v243 = vld [vmem:[%s232 + $0x78] sm:$0xff]
        %v244 = vld [vmem:[%s232 + $0x80] sm:$0xff]
        %v245 = vld [vmem:[%s232 + $0x90] sm:$0xff]
        %v246 = vld [vmem:[%s232 + $0x98] sm:$0xff]
        %v247 = vld [vmem:[%s232 + $0xa8] sm:$0xff]
        %v248 = vld [vmem:[%s232 + $0xb0] sm:$0xff]
        %v249 = vld [vmem:[%s232 + $0xc0] sm:$0xff]
        %v250 = vld [vmem:[%s232 + $0xc8] sm:$0xff]
        %v251 = vld [vmem:[%s232 + $0xd8] sm:$0xff]
        %v252 = vld [vmem:[%s232 + $0xe0] sm:$0xff]
        %v253 = vld [vmem:[%s232 + $0xf0] sm:$0xff]
        %v254 = vld [vmem:[%s232 + $0xf8] sm:$0xff]
        %v255 = vld [vmem:[%s232 + $0x108] sm:$0xff]
        %v256 = vld [vmem:[%s232 + $0x110] sm:$0xff]
        %v257 = vld [vmem:[%s232 + $0x120] sm:$0xff]
        %v258 = vld [vmem:[%s232 + $0x128] sm:$0xff]
        %v259 = vld [vmem:[%s232 + $0x138] sm:$0xff]
        %v260 = vld [vmem:[%s232 + $0x140] sm:$0xff]
        %v261 = vld [vmem:[%s232 + $0x150] sm:$0xff]
        %v262 = vld [vmem:[%s232 + $0x158] sm:$0xff]
        %v263 = vld [vmem:[%s232 + $0x168] sm:$0xff]
        %v264 = vld [vmem:[%s232 + $0x170] sm:$0xff]
        %v265 = vpack.c.bf16 %v234, %v233
        %v266 = vpack.c.bf16 %v236, %v235
        %v267 = vpack.c.bf16 %v238, %v237
        %v268 = vpack.c.bf16 %v240, %v239
        %v269 = vpack.c.bf16 %v242, %v241
        %v270 = vpack.c.bf16 %v244, %v243
        %v271 = vpack.c.bf16 %v246, %v245
        %v272 = vpack.c.bf16 %v248, %v247
        %v273 = vpack.c.bf16 %v250, %v249
        %v274 = vpack.c.bf16 %v252, %v251
        %v275 = vpack.c.bf16 %v254, %v253
        %v276 = vpack.c.bf16 %v256, %v255
        %v277 = vpack.c.bf16 %v258, %v257
        %v278 = vpack.c.bf16 %v260, %v259
        %v279 = vpack.c.bf16 %v262, %v261
        %v280 = vpack.c.bf16 %v264, %v263
        %v281 = vld [vmem:[%s232 + $0x1] sm:$0xff]
        %v282 = vld [vmem:[%s232 + $0x9] sm:$0xff]
        %v283 = vld [vmem:[%s232 + $0x19] sm:$0xff]
        %v284 = vld [vmem:[%s232 + $0x21] sm:$0xff]
        %v285 = vld [vmem:[%s232 + $0x31] sm:$0xff]
        %v286 = vld [vmem:[%s232 + $0x39] sm:$0xff]
        %v287 = vld [vmem:[%s232 + $0x49] sm:$0xff]
        %v288 = vld [vmem:[%s232 + $0x51] sm:$0xff]
        %v289 = vld [vmem:[%s232 + $0x61] sm:$0xff]
        %v290 = vld [vmem:[%s232 + $0x69] sm:$0xff]
        %v291 = vld [vmem:[%s232 + $0x79] sm:$0xff]
        %v292 = vld [vmem:[%s232 + $0x81] sm:$0xff]
        %v293 = vld [vmem:[%s232 + $0x91] sm:$0xff]
        %v294 = vld [vmem:[%s232 + $0x99] sm:$0xff]
        %v295 = vld [vmem:[%s232 + $0xa9] sm:$0xff]
        %v296 = vld [vmem:[%s232 + $0xb1] sm:$0xff]
        %v297 = vld [vmem:[%s232 + $0xc1] sm:$0xff]
        %v298 = vld [vmem:[%s232 + $0xc9] sm:$0xff]
        %v299 = vld [vmem:[%s232 + $0xd9] sm:$0xff]
        %v300 = vld [vmem:[%s232 + $0xe1] sm:$0xff]
        %v301 = vld [vmem:[%s232 + $0xf1] sm:$0xff]
        %v302 = vld [vmem:[%s232 + $0xf9] sm:$0xff]
        %v303 = vld [vmem:[%s232 + $0x109] sm:$0xff]
        %v304 = vld [vmem:[%s232 + $0x111] sm:$0xff]
        %v305 = vld [vmem:[%s232 + $0x121] sm:$0xff]
        %v306 = vld [vmem:[%s232 + $0x129] sm:$0xff]
        %v307 = vld [vmem:[%s232 + $0x139] sm:$0xff]
        %v308 = vld [vmem:[%s232 + $0x141] sm:$0xff]
        %v309 = vld [vmem:[%s232 + $0x151] sm:$0xff]
        %v310 = vld [vmem:[%s232 + $0x159] sm:$0xff]
        %v311 = vld [vmem:[%s232 + $0x169] sm:$0xff]
        %v312 = vld [vmem:[%s232 + $0x171] sm:$0xff]
        %v313 = vpack.c.bf16 %v282, %v281
        %v314 = vpack.c.bf16 %v284, %v283
        %v315 = vpack.c.bf16 %v286, %v285
        %v316 = vpack.c.bf16 %v288, %v287
        %v317 = vpack.c.bf16 %v290, %v289
        %v318 = vpack.c.bf16 %v292, %v291
        %v319 = vpack.c.bf16 %v294, %v293
        %v320 = vpack.c.bf16 %v296, %v295
        %v321 = vpack.c.bf16 %v298, %v297
        %v322 = vpack.c.bf16 %v300, %v299
        %v323 = vpack.c.bf16 %v302, %v301
        %v324 = vpack.c.bf16 %v304, %v303
        %v325 = vpack.c.bf16 %v306, %v305
        %v326 = vpack.c.bf16 %v308, %v307
        %v327 = vpack.c.bf16 %v310, %v309
        %v328 = vpack.c.bf16 %v312, %v311
        %vm329 = vcmask 31744
        %v331 = vsel %vm329, %v313, 0
        %v334 = vsel %vm329, %v314, 0
        %v337 = vsel %vm329, %v315, 0
        %v340 = vsel %vm329, %v316, 0
        %v343 = vsel %vm329, %v317, 0
        %v346 = vsel %vm329, %v318, 0
        %v349 = vsel %vm329, %v319, 0
        %v352 = vsel %vm329, %v320, 0
        %v355 = vsel %vm329, %v321, 0
        %v358 = vsel %vm329, %v322, 0
        %v361 = vsel %vm329, %v323, 0
        %v364 = vsel %vm329, %v324, 0
        %v367 = vsel %vm329, %v325, 0
        %v370 = vsel %vm329, %v326, 0
        %v373 = vsel %vm329, %v327, 0
        %v376 = vsel %vm329, %v328, 0
        %vm378 = vcmask 1041408
        %v380 = vsel %vm378, %v222, 0
        %382 = vmatprep.subr.bf16.mxu0 0
        %383 = vmatpush1.bf16.msra.mxu0 0
        %384 = vmatprep.subr.bf16.mxu0 0
        %385 = vmatpush1.bf16.msra.mxu0 0
        %386 = vmatprep.subr.bf16.mxu0 0
        %387 = vmatpush1.bf16.msra.mxu0 0
        %388 = vmatprep.subr.bf16.mxu0 0
        %389 = vmatpush1.bf16.msra.mxu0 0
        %390 = vmatprep.subr.bf16.mxu0 0
        %391 = vmatpush1.bf16.msra.mxu0 0
        %392 = vmatprep.subr.bf16.mxu0 0
        %393 = vmatpush1.bf16.msra.mxu0 0
        %394 = vmatprep.subr.bf16.mxu0 0
        %395 = vmatpush1.bf16.msra.mxu0 0
        %396 = vmatprep.subr.bf16.mxu0 0
        %397 = vmatpush1.bf16.msra.mxu0 %v380
        %398 = vmatprep.subr.bf16.mxu0 0
        %399 = vmatpush2.bf16.msra.mxu0 0
        %400 = vmatprep.subr.bf16.mxu0 0
        %401 = vmatpush2.bf16.msra.mxu0 0
        %402 = vmatprep.subr.bf16.mxu0 0
        %403 = vmatpush2.bf16.msra.mxu0 0
        %404 = vmatprep.subr.bf16.mxu0 0
        %405 = vmatpush2.bf16.msra.mxu0 0
        %406 = vmatprep.subr.bf16.mxu0 0
        %407 = vmatpush2.bf16.msra.mxu0 0
        %408 = vmatprep.subr.bf16.mxu0 0
        %409 = vmatpush2.bf16.msra.mxu0 0
        %410 = vmatprep.subr.bf16.mxu0 0
        %411 = vmatpush2.bf16.msra.mxu0 0
        %412 = vmatprep.subr.bf16.mxu0 0
        %413 = vmatpush2.bf16.msra.mxu0 0
        %414 = vmatprep.mubr.bf16.mxu0 0
        %415 = vmatmul.mubr.bf16.gmra.mxu0 %v331
        %v416 = vpop.f32.mrf.mxu0
        %v417 = vadd.f32 0.0, %v416
        %v418 = vpop.f32.mrf.mxu0
        %v419 = vpop.f32.mrf.mxu0
        %v420 = vadd.f32 0.0, %v419
        %v421 = vpop.f32.mrf.mxu0
        %422 = vmatprep.mubr.bf16.mxu0 0
        %423 = vmatmul.mubr.bf16.gmra.mxu0 %v334
        %v424 = vpop.f32.mrf.mxu0
        %v425 = vadd.f32 0.0, %v424
        %v426 = vpop.f32.mrf.mxu0
        %v427 = vpop.f32.mrf.mxu0
        %v428 = vadd.f32 0.0, %v427
        %v429 = vpop.f32.mrf.mxu0
        %430 = vmatprep.mubr.bf16.mxu0 0
        %431 = vmatmul.mubr.bf16.gmra.mxu0 %v337
        %v432 = vpop.f32.mrf.mxu0
        %v433 = vadd.f32 0.0, %v432
        %v434 = vpop.f32.mrf.mxu0
        %v435 = vpop.f32.mrf.mxu0
        %v436 = vadd.f32 0.0, %v435
        %v437 = vpop.f32.mrf.mxu0
        %438 = vmatprep.mubr.bf16.mxu0 0
        %439 = vmatmul.mubr.bf16.gmra.mxu0 %v340
        %v440 = vpop.f32.mrf.mxu0
        %v441 = vadd.f32 0.0, %v440
        %v442 = vpop.f32.mrf.mxu0
        %v443 = vpop.f32.mrf.mxu0
        %v444 = vadd.f32 0.0, %v443
        %v445 = vpop.f32.mrf.mxu0
        %446 = vmatprep.mubr.bf16.mxu0 0
        %447 = vmatmul.mubr.bf16.gmra.mxu0 %v343
        %v448 = vpop.f32.mrf.mxu0
        %v449 = vadd.f32 0.0, %v448
        %v450 = vpop.f32.mrf.mxu0
        %v451 = vpop.f32.mrf.mxu0
        %v452 = vadd.f32 0.0, %v451
        %v453 = vpop.f32.mrf.mxu0
        %454 = vmatprep.mubr.bf16.mxu0 0
        %455 = vmatmul.mubr.bf16.gmra.mxu0 %v346
        %v456 = vpop.f32.mrf.mxu0
        %v457 = vadd.f32 0.0, %v456
        %v458 = vpop.f32.mrf.mxu0
        %v459 = vpop.f32.mrf.mxu0
        %v460 = vadd.f32 0.0, %v459
        %v461 = vpop.f32.mrf.mxu0
        %462 = vmatprep.mubr.bf16.mxu0 0
        %463 = vmatmul.mubr.bf16.gmra.mxu0 %v349
        %v464 = vpop.f32.mrf.mxu0
        %v465 = vadd.f32 0.0, %v464
        %v466 = vpop.f32.mrf.mxu0
        %v467 = vpop.f32.mrf.mxu0
        %v468 = vadd.f32 0.0, %v467
        %v469 = vpop.f32.mrf.mxu0
        %470 = vmatprep.mubr.bf16.mxu0 0
        %471 = vmatmul.mubr.bf16.gmra.mxu0 %v352
        %v472 = vpop.f32.mrf.mxu0
        %v473 = vadd.f32 0.0, %v472
        %v474 = vpop.f32.mrf.mxu0
        %v475 = vpop.f32.mrf.mxu0
        %v476 = vadd.f32 0.0, %v475
        %v477 = vpop.f32.mrf.mxu0
        %478 = vmatprep.mubr.bf16.mxu0 0
        %479 = vmatmul.mubr.bf16.gmra.mxu0 %v355
        %v480 = vpop.f32.mrf.mxu0
        %v481 = vadd.f32 0.0, %v480
        %v482 = vpop.f32.mrf.mxu0
        %v483 = vpop.f32.mrf.mxu0
        %v484 = vadd.f32 0.0, %v483
        %v485 = vpop.f32.mrf.mxu0
        %486 = vmatprep.mubr.bf16.mxu0 0
        %487 = vmatmul.mubr.bf16.gmra.mxu0 %v358
        %v488 = vpop.f32.mrf.mxu0
        %v489 = vadd.f32 0.0, %v488
        %v490 = vpop.f32.mrf.mxu0
        %v491 = vpop.f32.mrf.mxu0
        %v492 = vadd.f32 0.0, %v491
        %v493 = vpop.f32.mrf.mxu0
        %494 = vmatprep.mubr.bf16.mxu0 0
        %495 = vmatmul.mubr.bf16.gmra.mxu0 %v361
        %v496 = vpop.f32.mrf.mxu0
        %v497 = vadd.f32 0.0, %v496
        %v498 = vpop.f32.mrf.mxu0
        %v499 = vpop.f32.mrf.mxu0
        %v500 = vadd.f32 0.0, %v499
        %v501 = vpop.f32.mrf.mxu0
        %502 = vmatprep.mubr.bf16.mxu0 0
        %503 = vmatmul.mubr.bf16.gmra.mxu0 %v364
        %v504 = vpop.f32.mrf.mxu0
        %v505 = vadd.f32 0.0, %v504
        %v506 = vpop.f32.mrf.mxu0
        %v507 = vpop.f32.mrf.mxu0
        %v508 = vadd.f32 0.0, %v507
        %v509 = vpop.f32.mrf.mxu0
        %510 = vmatprep.mubr.bf16.mxu0 0
        %511 = vmatmul.mubr.bf16.gmra.mxu0 %v367
        %v512 = vpop.f32.mrf.mxu0
        %v513 = vadd.f32 0.0, %v512
        %v514 = vpop.f32.mrf.mxu0
        %v515 = vpop.f32.mrf.mxu0
        %v516 = vadd.f32 0.0, %v515
        %v517 = vpop.f32.mrf.mxu0
        %518 = vmatprep.mubr.bf16.mxu0 0
        %519 = vmatmul.mubr.bf16.gmra.mxu0 %v370
        %v520 = vpop.f32.mrf.mxu0
        %v521 = vadd.f32 0.0, %v520
        %v522 = vpop.f32.mrf.mxu0
        %v523 = vpop.f32.mrf.mxu0
        %v524 = vadd.f32 0.0, %v523
        %v525 = vpop.f32.mrf.mxu0
        %526 = vmatprep.mubr.bf16.mxu0 0
        %527 = vmatmul.mubr.bf16.gmra.mxu0 %v373
        %v528 = vpop.f32.mrf.mxu0
        %v529 = vadd.f32 0.0, %v528
        %v530 = vpop.f32.mrf.mxu0
        %v531 = vpop.f32.mrf.mxu0
        %v532 = vadd.f32 0.0, %v531
        %v533 = vpop.f32.mrf.mxu0
        %534 = vmatprep.mubr.bf16.mxu0 0
        %535 = vmatmul.mubr.bf16.gmra.mxu0 %v376
        %v536 = vpop.f32.mrf.mxu0
        %v537 = vadd.f32 0.0, %v536
        %v538 = vpop.f32.mrf.mxu0
        %v539 = vpop.f32.mrf.mxu0
        %v540 = vadd.f32 0.0, %v539
        %v541 = vpop.f32.mrf.mxu0
        %542 = vdwg.mxu0
        %v544 = vsel %vm329, %v265, 0
        %v547 = vsel %vm329, %v266, 0
        %v550 = vsel %vm329, %v267, 0
        %v553 = vsel %vm329, %v268, 0
        %v556 = vsel %vm329, %v269, 0
        %v559 = vsel %vm329, %v270, 0
        %v562 = vsel %vm329, %v271, 0
        %v565 = vsel %vm329, %v272, 0
        %v568 = vsel %vm329, %v273, 0
        %v571 = vsel %vm329, %v274, 0
        %v574 = vsel %vm329, %v275, 0
        %v577 = vsel %vm329, %v276, 0
        %v580 = vsel %vm329, %v277, 0
        %v583 = vsel %vm329, %v278, 0
        %v586 = vsel %vm329, %v279, 0
        %v589 = vsel %vm329, %v280, 0
        %v592 = vsel %vm378, %v221, 0
        %594 = vmatprep.subr.bf16.mxu0 0
        %595 = vmatpush1.bf16.msra.mxu0 0
        %596 = vmatprep.subr.bf16.mxu0 0
        %597 = vmatpush1.bf16.msra.mxu0 0
        %598 = vmatprep.subr.bf16.mxu0 0
        %599 = vmatpush1.bf16.msra.mxu0 0
        %600 = vmatprep.subr.bf16.mxu0 0
        %601 = vmatpush1.bf16.msra.mxu0 0
        %602 = vmatprep.subr.bf16.mxu0 0
        %603 = vmatpush1.bf16.msra.mxu0 0
        %604 = vmatprep.subr.bf16.mxu0 0
        %605 = vmatpush1.bf16.msra.mxu0 0
        %606 = vmatprep.subr.bf16.mxu0 0
        %607 = vmatpush1.bf16.msra.mxu0 0
        %608 = vmatprep.subr.bf16.mxu0 0
        %609 = vmatpush1.bf16.msra.mxu0 %v592
        %610 = vmatprep.subr.bf16.mxu0 0
        %611 = vmatpush2.bf16.msra.mxu0 0
        %612 = vmatprep.subr.bf16.mxu0 0
        %613 = vmatpush2.bf16.msra.mxu0 0
        %614 = vmatprep.subr.bf16.mxu0 0
        %615 = vmatpush2.bf16.msra.mxu0 0
        %616 = vmatprep.subr.bf16.mxu0 0
        %617 = vmatpush2.bf16.msra.mxu0 0
        %618 = vmatprep.subr.bf16.mxu0 0
        %619 = vmatpush2.bf16.msra.mxu0 0
        %620 = vmatprep.subr.bf16.mxu0 0
        %621 = vmatpush2.bf16.msra.mxu0 0
        %622 = vmatprep.subr.bf16.mxu0 0
        %623 = vmatpush2.bf16.msra.mxu0 0
        %624 = vmatprep.subr.bf16.mxu0 0
        %625 = vmatpush2.bf16.msra.mxu0 0
        %626 = vmatprep.mubr.bf16.mxu0 0
        %627 = vmatmul.mubr.bf16.gmra.mxu0 %v544
        %v628 = vpop.f32.mrf.mxu0
        %v629 = vadd.f32 %v417, %v628
        %v630 = vpop.f32.mrf.mxu0
        %v631 = vpop.f32.mrf.mxu0
        %v632 = vadd.f32 %v420, %v631
        %v633 = vpop.f32.mrf.mxu0
        %634 = vmatprep.mubr.bf16.mxu0 0
        %635 = vmatmul.mubr.bf16.gmra.mxu0 %v547
        %v636 = vpop.f32.mrf.mxu0
        %v637 = vadd.f32 %v425, %v636
        %v638 = vpop.f32.mrf.mxu0
        %v639 = vpop.f32.mrf.mxu0
        %v640 = vadd.f32 %v428, %v639
        %v641 = vpop.f32.mrf.mxu0
        %642 = vmatprep.mubr.bf16.mxu0 0
        %643 = vmatmul.mubr.bf16.gmra.mxu0 %v550
        %v644 = vpop.f32.mrf.mxu0
        %v645 = vadd.f32 %v433, %v644
        %v646 = vpop.f32.mrf.mxu0
        %v647 = vpop.f32.mrf.mxu0
        %v648 = vadd.f32 %v436, %v647
        %v649 = vpop.f32.mrf.mxu0
        %650 = vmatprep.mubr.bf16.mxu0 0
        %651 = vmatmul.mubr.bf16.gmra.mxu0 %v553
        %v652 = vpop.f32.mrf.mxu0
        %v653 = vadd.f32 %v441, %v652
        %v654 = vpop.f32.mrf.mxu0
        %v655 = vpop.f32.mrf.mxu0
        %v656 = vadd.f32 %v444, %v655
        %v657 = vpop.f32.mrf.mxu0
        %658 = vmatprep.mubr.bf16.mxu0 0
        %659 = vmatmul.mubr.bf16.gmra.mxu0 %v556
        %v660 = vpop.f32.mrf.mxu0
        %v661 = vadd.f32 %v449, %v660
        %v662 = vpop.f32.mrf.mxu0
        %v663 = vpop.f32.mrf.mxu0
        %v664 = vadd.f32 %v452, %v663
        %v665 = vpop.f32.mrf.mxu0
        %666 = vmatprep.mubr.bf16.mxu0 0
        %667 = vmatmul.mubr.bf16.gmra.mxu0 %v559
        %v668 = vpop.f32.mrf.mxu0
        %v669 = vadd.f32 %v457, %v668
        %v670 = vpop.f32.mrf.mxu0
        %v671 = vpop.f32.mrf.mxu0
        %v672 = vadd.f32 %v460, %v671
        %v673 = vpop.f32.mrf.mxu0
        %674 = vmatprep.mubr.bf16.mxu0 0
        %675 = vmatmul.mubr.bf16.gmra.mxu0 %v562
        %v676 = vpop.f32.mrf.mxu0
        %v677 = vadd.f32 %v465, %v676
        %v678 = vpop.f32.mrf.mxu0
        %v679 = vpop.f32.mrf.mxu0
        %v680 = vadd.f32 %v468, %v679
        %v681 = vpop.f32.mrf.mxu0
        %682 = vmatprep.mubr.bf16.mxu0 0
        %683 = vmatmul.mubr.bf16.gmra.mxu0 %v565
        %v684 = vpop.f32.mrf.mxu0
        %v685 = vadd.f32 %v473, %v684
        %v686 = vpop.f32.mrf.mxu0
        %v687 = vpop.f32.mrf.mxu0
        %v688 = vadd.f32 %v476, %v687
        %v689 = vpop.f32.mrf.mxu0
        %690 = vmatprep.mubr.bf16.mxu0 0
        %691 = vmatmul.mubr.bf16.gmra.mxu0 %v568
        %v692 = vpop.f32.mrf.mxu0
        %v693 = vadd.f32 %v481, %v692
        %v694 = vpop.f32.mrf.mxu0
        %v695 = vpop.f32.mrf.mxu0
        %v696 = vadd.f32 %v484, %v695
        %v697 = vpop.f32.mrf.mxu0
        %698 = vmatprep.mubr.bf16.mxu0 0
        %699 = vmatmul.mubr.bf16.gmra.mxu0 %v571
        %v700 = vpop.f32.mrf.mxu0
        %v701 = vadd.f32 %v489, %v700
        %v702 = vpop.f32.mrf.mxu0
        %v703 = vpop.f32.mrf.mxu0
        %v704 = vadd.f32 %v492, %v703
        %v705 = vpop.f32.mrf.mxu0
        %706 = vmatprep.mubr.bf16.mxu0 0
        %707 = vmatmul.mubr.bf16.gmra.mxu0 %v574
        %v708 = vpop.f32.mrf.mxu0
        %v709 = vadd.f32 %v497, %v708
        %v710 = vpop.f32.mrf.mxu0
        %v711 = vpop.f32.mrf.mxu0
        %v712 = vadd.f32 %v500, %v711
        %v713 = vpop.f32.mrf.mxu0
        %714 = vmatprep.mubr.bf16.mxu0 0
        %715 = vmatmul.mubr.bf16.gmra.mxu0 %v577
        %v716 = vpop.f32.mrf.mxu0
        %v717 = vadd.f32 %v505, %v716
        %v718 = vpop.f32.mrf.mxu0
        %v719 = vpop.f32.mrf.mxu0
        %v720 = vadd.f32 %v508, %v719
        %v721 = vpop.f32.mrf.mxu0
        %722 = vmatprep.mubr.bf16.mxu0 0
        %723 = vmatmul.mubr.bf16.gmra.mxu0 %v580
        %v724 = vpop.f32.mrf.mxu0
        %v725 = vadd.f32 %v513, %v724
        %v726 = vpop.f32.mrf.mxu0
        %v727 = vpop.f32.mrf.mxu0
        %v728 = vadd.f32 %v516, %v727
        %v729 = vpop.f32.mrf.mxu0
        %730 = vmatprep.mubr.bf16.mxu0 0
        %731 = vmatmul.mubr.bf16.gmra.mxu0 %v583
        %v732 = vpop.f32.mrf.mxu0
        %v733 = vadd.f32 %v521, %v732
        %v734 = vpop.f32.mrf.mxu0
        %v735 = vpop.f32.mrf.mxu0
        %v736 = vadd.f32 %v524, %v735
        %v737 = vpop.f32.mrf.mxu0
        %738 = vmatprep.mubr.bf16.mxu0 0
        %739 = vmatmul.mubr.bf16.gmra.mxu0 %v586
        %v740 = vpop.f32.mrf.mxu0
        %v741 = vadd.f32 %v529, %v740
        %v742 = vpop.f32.mrf.mxu0
        %v743 = vpop.f32.mrf.mxu0
        %v744 = vadd.f32 %v532, %v743
        %v745 = vpop.f32.mrf.mxu0
        %746 = vmatprep.mubr.bf16.mxu0 0
        %747 = vmatmul.mubr.bf16.gmra.mxu0 %v589
        %v748 = vpop.f32.mrf.mxu0
        %v749 = vadd.f32 %v537, %v748
        %v750 = vpop.f32.mrf.mxu0
        %v751 = vpop.f32.mrf.mxu0
        %v752 = vadd.f32 %v540, %v751
        %v753 = vpop.f32.mrf.mxu0
        %754 = vdwg.mxu0
        %v755 = vld [vmem:[%s232 + $0x2] sm:$0xff]
        %v756 = vld [vmem:[%s232 + $0xa] sm:$0xff]
        %v757 = vld [vmem:[%s232 + $0x1a] sm:$0xff]
        %v758 = vld [vmem:[%s232 + $0x22] sm:$0xff]
        %v759 = vld [vmem:[%s232 + $0x32] sm:$0xff]
        %v760 = vld [vmem:[%s232 + $0x3a] sm:$0xff]
        %v761 = vld [vmem:[%s232 + $0x4a] sm:$0xff]
        %v762 = vld [vmem:[%s232 + $0x52] sm:$0xff]
        %v763 = vld [vmem:[%s232 + $0x62] sm:$0xff]
        %v764 = vld [vmem:[%s232 + $0x6a] sm:$0xff]
        %v765 = vld [vmem:[%s232 + $0x7a] sm:$0xff]
        %v766 = vld [vmem:[%s232 + $0x82] sm:$0xff]
        %v767 = vld [vmem:[%s232 + $0x92] sm:$0xff]
        %v768 = vld [vmem:[%s232 + $0x9a] sm:$0xff]
        %v769 = vld [vmem:[%s232 + $0xaa] sm:$0xff]
        %v770 = vld [vmem:[%s232 + $0xb2] sm:$0xff]
        %v771 = vld [vmem:[%s232 + $0xc2] sm:$0xff]
        %v772 = vld [vmem:[%s232 + $0xca] sm:$0xff]
        %v773 = vld [vmem:[%s232 + $0xda] sm:$0xff]
        %v774 = vld [vmem:[%s232 + $0xe2] sm:$0xff]
        %v775 = vld [vmem:[%s232 + $0xf2] sm:$0xff]
        %v776 = vld [vmem:[%s232 + $0xfa] sm:$0xff]
        %v777 = vld [vmem:[%s232 + $0x10a] sm:$0xff]
        %v778 = vld [vmem:[%s232 + $0x112] sm:$0xff]
        %v779 = vld [vmem:[%s232 + $0x122] sm:$0xff]
        %v780 = vld [vmem:[%s232 + $0x12a] sm:$0xff]
        %v781 = vld [vmem:[%s232 + $0x13a] sm:$0xff]
        %v782 = vld [vmem:[%s232 + $0x142] sm:$0xff]
        %v783 = vld [vmem:[%s232 + $0x152] sm:$0xff]
        %v784 = vld [vmem:[%s232 + $0x15a] sm:$0xff]
        %v785 = vld [vmem:[%s232 + $0x16a] sm:$0xff]
        %v786 = vld [vmem:[%s232 + $0x172] sm:$0xff]
        %v787 = vpack.c.bf16 %v756, %v755
        %v788 = vpack.c.bf16 %v758, %v757
        %v789 = vpack.c.bf16 %v760, %v759
        %v790 = vpack.c.bf16 %v762, %v761
        %v791 = vpack.c.bf16 %v764, %v763
        %v792 = vpack.c.bf16 %v766, %v765
        %v793 = vpack.c.bf16 %v768, %v767
        %v794 = vpack.c.bf16 %v770, %v769
        %v795 = vpack.c.bf16 %v772, %v771
        %v796 = vpack.c.bf16 %v774, %v773
        %v797 = vpack.c.bf16 %v776, %v775
        %v798 = vpack.c.bf16 %v778, %v777
        %v799 = vpack.c.bf16 %v780, %v779
        %v800 = vpack.c.bf16 %v782, %v781
        %v801 = vpack.c.bf16 %v784, %v783
        %v802 = vpack.c.bf16 %v786, %v785
        %v804 = vsel %vm329, %v787, 0
        %v807 = vsel %vm329, %v788, 0
        %v810 = vsel %vm329, %v789, 0
        %v813 = vsel %vm329, %v790, 0
        %v816 = vsel %vm329, %v791, 0
        %v819 = vsel %vm329, %v792, 0
        %v822 = vsel %vm329, %v793, 0
        %v825 = vsel %vm329, %v794, 0
        %v828 = vsel %vm329, %v795, 0
        %v831 = vsel %vm329, %v796, 0
        %v834 = vsel %vm329, %v797, 0
        %v837 = vsel %vm329, %v798, 0
        %v840 = vsel %vm329, %v799, 0
        %v843 = vsel %vm329, %v800, 0
        %v846 = vsel %vm329, %v801, 0
        %v849 = vsel %vm329, %v802, 0
        %v852 = vsel %vm378, %v223, 0
        %854 = vmatprep.subr.bf16.mxu0 0
        %855 = vmatpush1.bf16.msra.mxu0 0
        %856 = vmatprep.subr.bf16.mxu0 0
        %857 = vmatpush1.bf16.msra.mxu0 0
        %858 = vmatprep.subr.bf16.mxu0 0
        %859 = vmatpush1.bf16.msra.mxu0 0
        %860 = vmatprep.subr.bf16.mxu0 0
        %861 = vmatpush1.bf16.msra.mxu0 0
        %862 = vmatprep.subr.bf16.mxu0 0
        %863 = vmatpush1.bf16.msra.mxu0 0
        %864 = vmatprep.subr.bf16.mxu0 0
        %865 = vmatpush1.bf16.msra.mxu0 0
        %866 = vmatprep.subr.bf16.mxu0 0
        %867 = vmatpush1.bf16.msra.mxu0 0
        %868 = vmatprep.subr.bf16.mxu0 0
        %869 = vmatpush1.bf16.msra.mxu0 %v852
        %870 = vmatprep.subr.bf16.mxu0 0
        %871 = vmatpush2.bf16.msra.mxu0 0
        %872 = vmatprep.subr.bf16.mxu0 0
        %873 = vmatpush2.bf16.msra.mxu0 0
        %874 = vmatprep.subr.bf16.mxu0 0
        %875 = vmatpush2.bf16.msra.mxu0 0
        %876 = vmatprep.subr.bf16.mxu0 0
        %877 = vmatpush2.bf16.msra.mxu0 0
        %878 = vmatprep.subr.bf16.mxu0 0
        %879 = vmatpush2.bf16.msra.mxu0 0
        %880 = vmatprep.subr.bf16.mxu0 0
        %881 = vmatpush2.bf16.msra.mxu0 0
        %882 = vmatprep.subr.bf16.mxu0 0
        %883 = vmatpush2.bf16.msra.mxu0 0
        %884 = vmatprep.subr.bf16.mxu0 0
        %885 = vmatpush2.bf16.msra.mxu0 0
        %886 = vmatprep.mubr.bf16.mxu0 0
        %887 = vmatmul.mubr.bf16.gmra.mxu0 %v804
        %v888 = vpop.f32.mrf.mxu0
        %v889 = vadd.f32 0.0, %v888
        %v890 = vpop.f32.mrf.mxu0
        %v891 = vpop.f32.mrf.mxu0
        %v892 = vadd.f32 0.0, %v891
        %v893 = vpop.f32.mrf.mxu0
        %894 = vmatprep.mubr.bf16.mxu0 0
        %895 = vmatmul.mubr.bf16.gmra.mxu0 %v807
        %v896 = vpop.f32.mrf.mxu0
        %v897 = vadd.f32 0.0, %v896
        %v898 = vpop.f32.mrf.mxu0
        %v899 = vpop.f32.mrf.mxu0
        %v900 = vadd.f32 0.0, %v899
        %v901 = vpop.f32.mrf.mxu0
        %902 = vmatprep.mubr.bf16.mxu0 0
        %903 = vmatmul.mubr.bf16.gmra.mxu0 %v810
        %v904 = vpop.f32.mrf.mxu0
        %v905 = vadd.f32 0.0, %v904
        %v906 = vpop.f32.mrf.mxu0
        %v907 = vpop.f32.mrf.mxu0
        %v908 = vadd.f32 0.0, %v907
        %v909 = vpop.f32.mrf.mxu0
        %910 = vmatprep.mubr.bf16.mxu0 0
        %911 = vmatmul.mubr.bf16.gmra.mxu0 %v813
        %v912 = vpop.f32.mrf.mxu0
        %v913 = vadd.f32 0.0, %v912
        %v914 = vpop.f32.mrf.mxu0
        %v915 = vpop.f32.mrf.mxu0
        %v916 = vadd.f32 0.0, %v915
        %v917 = vpop.f32.mrf.mxu0
        %918 = vmatprep.mubr.bf16.mxu0 0
        %919 = vmatmul.mubr.bf16.gmra.mxu0 %v816
        %v920 = vpop.f32.mrf.mxu0
        %v921 = vadd.f32 0.0, %v920
        %v922 = vpop.f32.mrf.mxu0
        %v923 = vpop.f32.mrf.mxu0
        %v924 = vadd.f32 0.0, %v923
        %v925 = vpop.f32.mrf.mxu0
        %926 = vmatprep.mubr.bf16.mxu0 0
        %927 = vmatmul.mubr.bf16.gmra.mxu0 %v819
        %v928 = vpop.f32.mrf.mxu0
        %v929 = vadd.f32 0.0, %v928
        %v930 = vpop.f32.mrf.mxu0
        %v931 = vpop.f32.mrf.mxu0
        %v932 = vadd.f32 0.0, %v931
        %v933 = vpop.f32.mrf.mxu0
        %934 = vmatprep.mubr.bf16.mxu0 0
        %935 = vmatmul.mubr.bf16.gmra.mxu0 %v822
        %v936 = vpop.f32.mrf.mxu0
        %v937 = vadd.f32 0.0, %v936
        %v938 = vpop.f32.mrf.mxu0
        %v939 = vpop.f32.mrf.mxu0
        %v940 = vadd.f32 0.0, %v939
        %v941 = vpop.f32.mrf.mxu0
        %942 = vmatprep.mubr.bf16.mxu0 0
        %943 = vmatmul.mubr.bf16.gmra.mxu0 %v825
        %v944 = vpop.f32.mrf.mxu0
        %v945 = vadd.f32 0.0, %v944
        %v946 = vpop.f32.mrf.mxu0
        %v947 = vpop.f32.mrf.mxu0
        %v948 = vadd.f32 0.0, %v947
        %v949 = vpop.f32.mrf.mxu0
        %950 = vmatprep.mubr.bf16.mxu0 0
        %951 = vmatmul.mubr.bf16.gmra.mxu0 %v828
        %v952 = vpop.f32.mrf.mxu0
        %v953 = vadd.f32 0.0, %v952
        %v954 = vpop.f32.mrf.mxu0
        %v955 = vpop.f32.mrf.mxu0
        %v956 = vadd.f32 0.0, %v955
        %v957 = vpop.f32.mrf.mxu0
        %958 = vmatprep.mubr.bf16.mxu0 0
        %959 = vmatmul.mubr.bf16.gmra.mxu0 %v831
        %v960 = vpop.f32.mrf.mxu0
        %v961 = vadd.f32 0.0, %v960
        %v962 = vpop.f32.mrf.mxu0
        %v963 = vpop.f32.mrf.mxu0
        %v964 = vadd.f32 0.0, %v963
        %v965 = vpop.f32.mrf.mxu0
        %966 = vmatprep.mubr.bf16.mxu0 0
        %967 = vmatmul.mubr.bf16.gmra.mxu0 %v834
        %v968 = vpop.f32.mrf.mxu0
        %v969 = vadd.f32 0.0, %v968
        %v970 = vpop.f32.mrf.mxu0
        %v971 = vpop.f32.mrf.mxu0
        %v972 = vadd.f32 0.0, %v971
        %v973 = vpop.f32.mrf.mxu0
        %974 = vmatprep.mubr.bf16.mxu0 0
        %975 = vmatmul.mubr.bf16.gmra.mxu0 %v837
        %v976 = vpop.f32.mrf.mxu0
        %v977 = vadd.f32 0.0, %v976
        %v978 = vpop.f32.mrf.mxu0
        %v979 = vpop.f32.mrf.mxu0
        %v980 = vadd.f32 0.0, %v979
        %v981 = vpop.f32.mrf.mxu0
        %982 = vmatprep.mubr.bf16.mxu0 0
        %983 = vmatmul.mubr.bf16.gmra.mxu0 %v840
        %v984 = vpop.f32.mrf.mxu0
        %v985 = vadd.f32 0.0, %v984
        %v986 = vpop.f32.mrf.mxu0
        %v987 = vpop.f32.mrf.mxu0
        %v988 = vadd.f32 0.0, %v987
        %v989 = vpop.f32.mrf.mxu0
        %990 = vmatprep.mubr.bf16.mxu0 0
        %991 = vmatmul.mubr.bf16.gmra.mxu0 %v843
        %v992 = vpop.f32.mrf.mxu0
        %v993 = vadd.f32 0.0, %v992
        %v994 = vpop.f32.mrf.mxu0
        %v995 = vpop.f32.mrf.mxu0
        %v996 = vadd.f32 0.0, %v995
        %v997 = vpop.f32.mrf.mxu0
        %998 = vmatprep.mubr.bf16.mxu0 0
        %999 = vmatmul.mubr.bf16.gmra.mxu0 %v846
        %v1000 = vpop.f32.mrf.mxu0
        %v1001 = vadd.f32 0.0, %v1000
        %v1002 = vpop.f32.mrf.mxu0
        %v1003 = vpop.f32.mrf.mxu0
        %v1004 = vadd.f32 0.0, %v1003
        %v1005 = vpop.f32.mrf.mxu0
        %1006 = vmatprep.mubr.bf16.mxu0 0
        %1007 = vmatmul.mubr.bf16.gmra.mxu0 %v849
        %v1008 = vpop.f32.mrf.mxu0
        %v1009 = vadd.f32 0.0, %v1008
        %v1010 = vpop.f32.mrf.mxu0
        %v1011 = vpop.f32.mrf.mxu0
        %v1012 = vadd.f32 0.0, %v1011
        %v1013 = vpop.f32.mrf.mxu0
        %1014 = vdwg.mxu0
        %v1015 = vadd.f32 %v629, %v889
        %v1016 = vadd.f32 %v632, %v892
        %v1017 = vadd.f32 %v637, %v897
        %v1018 = vadd.f32 %v640, %v900
        %v1019 = vadd.f32 %v645, %v905
        %v1020 = vadd.f32 %v648, %v908
        %v1021 = vadd.f32 %v653, %v913
        %v1022 = vadd.f32 %v656, %v916
        %v1023 = vadd.f32 %v661, %v921
        %v1024 = vadd.f32 %v664, %v924
        %v1025 = vadd.f32 %v669, %v929
        %v1026 = vadd.f32 %v672, %v932
        %v1027 = vadd.f32 %v677, %v937
        %v1028 = vadd.f32 %v680, %v940
        %v1029 = vadd.f32 %v685, %v945
        %v1030 = vadd.f32 %v688, %v948
        %v1031 = vadd.f32 %v693, %v953
        %v1032 = vadd.f32 %v696, %v956
        %v1033 = vadd.f32 %v701, %v961
        %v1034 = vadd.f32 %v704, %v964
        %v1035 = vadd.f32 %v709, %v969
        %v1036 = vadd.f32 %v712, %v972
        %v1037 = vadd.f32 %v717, %v977
        %v1038 = vadd.f32 %v720, %v980
        %v1039 = vadd.f32 %v725, %v985
        %v1040 = vadd.f32 %v728, %v988
        %v1041 = vadd.f32 %v733, %v993
        %v1042 = vadd.f32 %v736, %v996
        %v1043 = vadd.f32 %v741, %v1001
        %v1044 = vadd.f32 %v744, %v1004
        %v1045 = vadd.f32 %v749, %v1009
        %v1046 = vadd.f32 %v752, %v1012
        %s1047 = sadd.s32 %s230, 1
        %s1048 = smul.u32 %s1047, 24
        %s1049 = scalar_lea.vmem %s182, %s1048
        %v1050 = vld [vmem:[%s1049] sm:$0xff]
        %v1051 = vld [vmem:[%s1049 + $0x8] sm:$0xff]
        %v1052 = vld [vmem:[%s1049 + $0x18] sm:$0xff]
        %v1053 = vld [vmem:[%s1049 + $0x20] sm:$0xff]
        %v1054 = vld [vmem:[%s1049 + $0x30] sm:$0xff]
        %v1055 = vld [vmem:[%s1049 + $0x38] sm:$0xff]
        %v1056 = vld [vmem:[%s1049 + $0x48] sm:$0xff]
        %v1057 = vld [vmem:[%s1049 + $0x50] sm:$0xff]
        %v1058 = vld [vmem:[%s1049 + $0x60] sm:$0xff]
        %v1059 = vld [vmem:[%s1049 + $0x68] sm:$0xff]
        %v1060 = vld [vmem:[%s1049 + $0x78] sm:$0xff]
        %v1061 = vld [vmem:[%s1049 + $0x80] sm:$0xff]
        %v1062 = vld [vmem:[%s1049 + $0x90] sm:$0xff]
        %v1063 = vld [vmem:[%s1049 + $0x98] sm:$0xff]
        %v1064 = vld [vmem:[%s1049 + $0xa8] sm:$0xff]
        %v1065 = vld [vmem:[%s1049 + $0xb0] sm:$0xff]
        %v1066 = vld [vmem:[%s1049 + $0xc0] sm:$0xff]
        %v1067 = vld [vmem:[%s1049 + $0xc8] sm:$0xff]
        %v1068 = vld [vmem:[%s1049 + $0xd8] sm:$0xff]
        %v1069 = vld [vmem:[%s1049 + $0xe0] sm:$0xff]
        %v1070 = vld [vmem:[%s1049 + $0xf0] sm:$0xff]
        %v1071 = vld [vmem:[%s1049 + $0xf8] sm:$0xff]
        %v1072 = vld [vmem:[%s1049 + $0x108] sm:$0xff]
        %v1073 = vld [vmem:[%s1049 + $0x110] sm:$0xff]
        %v1074 = vld [vmem:[%s1049 + $0x120] sm:$0xff]
        %v1075 = vld [vmem:[%s1049 + $0x128] sm:$0xff]
        %v1076 = vld [vmem:[%s1049 + $0x138] sm:$0xff]
        %v1077 = vld [vmem:[%s1049 + $0x140] sm:$0xff]
        %v1078 = vld [vmem:[%s1049 + $0x150] sm:$0xff]
        %v1079 = vld [vmem:[%s1049 + $0x158] sm:$0xff]
        %v1080 = vld [vmem:[%s1049 + $0x168] sm:$0xff]
        %v1081 = vld [vmem:[%s1049 + $0x170] sm:$0xff]
        %v1082 = vpack.c.bf16 %v1051, %v1050
        %v1083 = vpack.c.bf16 %v1053, %v1052
        %v1084 = vpack.c.bf16 %v1055, %v1054
        %v1085 = vpack.c.bf16 %v1057, %v1056
        %v1086 = vpack.c.bf16 %v1059, %v1058
        %v1087 = vpack.c.bf16 %v1061, %v1060
        %v1088 = vpack.c.bf16 %v1063, %v1062
        %v1089 = vpack.c.bf16 %v1065, %v1064
        %v1090 = vpack.c.bf16 %v1067, %v1066
        %v1091 = vpack.c.bf16 %v1069, %v1068
        %v1092 = vpack.c.bf16 %v1071, %v1070
        %v1093 = vpack.c.bf16 %v1073, %v1072
        %v1094 = vpack.c.bf16 %v1075, %v1074
        %v1095 = vpack.c.bf16 %v1077, %v1076
        %v1096 = vpack.c.bf16 %v1079, %v1078
        %v1097 = vpack.c.bf16 %v1081, %v1080
        %v1099 = vsel %vm329, %v1082, 0
        %v1102 = vsel %vm329, %v1083, 0
        %v1105 = vsel %vm329, %v1084, 0
        %v1108 = vsel %vm329, %v1085, 0
        %v1111 = vsel %vm329, %v1086, 0
        %v1114 = vsel %vm329, %v1087, 0
        %v1117 = vsel %vm329, %v1088, 0
        %v1120 = vsel %vm329, %v1089, 0
        %v1123 = vsel %vm329, %v1090, 0
        %v1126 = vsel %vm329, %v1091, 0
        %v1129 = vsel %vm329, %v1092, 0
        %v1132 = vsel %vm329, %v1093, 0
        %v1135 = vsel %vm329, %v1094, 0
        %v1138 = vsel %vm329, %v1095, 0
        %v1141 = vsel %vm329, %v1096, 0
        %v1144 = vsel %vm329, %v1097, 0
        %v1147 = vsel %vm378, %v224, 0
        %1149 = vmatprep.subr.bf16.mxu0 0
        %1150 = vmatpush1.bf16.msra.mxu0 0
        %1151 = vmatprep.subr.bf16.mxu0 0
        %1152 = vmatpush1.bf16.msra.mxu0 0
        %1153 = vmatprep.subr.bf16.mxu0 0
        %1154 = vmatpush1.bf16.msra.mxu0 0
        %1155 = vmatprep.subr.bf16.mxu0 0
        %1156 = vmatpush1.bf16.msra.mxu0 0
        %1157 = vmatprep.subr.bf16.mxu0 0
        %1158 = vmatpush1.bf16.msra.mxu0 0
        %1159 = vmatprep.subr.bf16.mxu0 0
        %1160 = vmatpush1.bf16.msra.mxu0 0
        %1161 = vmatprep.subr.bf16.mxu0 0
        %1162 = vmatpush1.bf16.msra.mxu0 0
        %1163 = vmatprep.subr.bf16.mxu0 0
        %1164 = vmatpush1.bf16.msra.mxu0 %v1147
        %1165 = vmatprep.subr.bf16.mxu0 0
        %1166 = vmatpush2.bf16.msra.mxu0 0
        %1167 = vmatprep.subr.bf16.mxu0 0
        %1168 = vmatpush2.bf16.msra.mxu0 0
        %1169 = vmatprep.subr.bf16.mxu0 0
        %1170 = vmatpush2.bf16.msra.mxu0 0
        %1171 = vmatprep.subr.bf16.mxu0 0
        %1172 = vmatpush2.bf16.msra.mxu0 0
        %1173 = vmatprep.subr.bf16.mxu0 0
        %1174 = vmatpush2.bf16.msra.mxu0 0
        %1175 = vmatprep.subr.bf16.mxu0 0
        %1176 = vmatpush2.bf16.msra.mxu0 0
        %1177 = vmatprep.subr.bf16.mxu0 0
        %1178 = vmatpush2.bf16.msra.mxu0 0
        %1179 = vmatprep.subr.bf16.mxu0 0
        %1180 = vmatpush2.bf16.msra.mxu0 0
        %1181 = vmatprep.mubr.bf16.mxu0 0
        %1182 = vmatmul.mubr.bf16.gmra.mxu0 %v1099
        %v1183 = vpop.f32.mrf.mxu0
        %v1184 = vadd.f32 0.0, %v1183
        %v1185 = vpop.f32.mrf.mxu0
        %v1186 = vpop.f32.mrf.mxu0
        %v1187 = vadd.f32 0.0, %v1186
        %v1188 = vpop.f32.mrf.mxu0
        %1189 = vmatprep.mubr.bf16.mxu0 0
        %1190 = vmatmul.mubr.bf16.gmra.mxu0 %v1102
        %v1191 = vpop.f32.mrf.mxu0
        %v1192 = vadd.f32 0.0, %v1191
        %v1193 = vpop.f32.mrf.mxu0
        %v1194 = vpop.f32.mrf.mxu0
        %v1195 = vadd.f32 0.0, %v1194
        %v1196 = vpop.f32.mrf.mxu0
        %1197 = vmatprep.mubr.bf16.mxu0 0
        %1198 = vmatmul.mubr.bf16.gmra.mxu0 %v1105
        %v1199 = vpop.f32.mrf.mxu0
        %v1200 = vadd.f32 0.0, %v1199
        %v1201 = vpop.f32.mrf.mxu0
        %v1202 = vpop.f32.mrf.mxu0
        %v1203 = vadd.f32 0.0, %v1202
        %v1204 = vpop.f32.mrf.mxu0
        %1205 = vmatprep.mubr.bf16.mxu0 0
        %1206 = vmatmul.mubr.bf16.gmra.mxu0 %v1108
        %v1207 = vpop.f32.mrf.mxu0
        %v1208 = vadd.f32 0.0, %v1207
        %v1209 = vpop.f32.mrf.mxu0
        %v1210 = vpop.f32.mrf.mxu0
        %v1211 = vadd.f32 0.0, %v1210
        %v1212 = vpop.f32.mrf.mxu0
        %1213 = vmatprep.mubr.bf16.mxu0 0
        %1214 = vmatmul.mubr.bf16.gmra.mxu0 %v1111
        %v1215 = vpop.f32.mrf.mxu0
        %v1216 = vadd.f32 0.0, %v1215
        %v1217 = vpop.f32.mrf.mxu0
        %v1218 = vpop.f32.mrf.mxu0
        %v1219 = vadd.f32 0.0, %v1218
        %v1220 = vpop.f32.mrf.mxu0
        %1221 = vmatprep.mubr.bf16.mxu0 0
        %1222 = vmatmul.mubr.bf16.gmra.mxu0 %v1114
        %v1223 = vpop.f32.mrf.mxu0
        %v1224 = vadd.f32 0.0, %v1223
        %v1225 = vpop.f32.mrf.mxu0
        %v1226 = vpop.f32.mrf.mxu0
        %v1227 = vadd.f32 0.0, %v1226
        %v1228 = vpop.f32.mrf.mxu0
        %1229 = vmatprep.mubr.bf16.mxu0 0
        %1230 = vmatmul.mubr.bf16.gmra.mxu0 %v1117
        %v1231 = vpop.f32.mrf.mxu0
        %v1232 = vadd.f32 0.0, %v1231
        %v1233 = vpop.f32.mrf.mxu0
        %v1234 = vpop.f32.mrf.mxu0
        %v1235 = vadd.f32 0.0, %v1234
        %v1236 = vpop.f32.mrf.mxu0
        %1237 = vmatprep.mubr.bf16.mxu0 0
        %1238 = vmatmul.mubr.bf16.gmra.mxu0 %v1120
        %v1239 = vpop.f32.mrf.mxu0
        %v1240 = vadd.f32 0.0, %v1239
        %v1241 = vpop.f32.mrf.mxu0
        %v1242 = vpop.f32.mrf.mxu0
        %v1243 = vadd.f32 0.0, %v1242
        %v1244 = vpop.f32.mrf.mxu0
        %1245 = vmatprep.mubr.bf16.mxu0 0
        %1246 = vmatmul.mubr.bf16.gmra.mxu0 %v1123
        %v1247 = vpop.f32.mrf.mxu0
        %v1248 = vadd.f32 0.0, %v1247
        %v1249 = vpop.f32.mrf.mxu0
        %v1250 = vpop.f32.mrf.mxu0
        %v1251 = vadd.f32 0.0, %v1250
        %v1252 = vpop.f32.mrf.mxu0
        %1253 = vmatprep.mubr.bf16.mxu0 0
        %1254 = vmatmul.mubr.bf16.gmra.mxu0 %v1126
        %v1255 = vpop.f32.mrf.mxu0
        %v1256 = vadd.f32 0.0, %v1255
        %v1257 = vpop.f32.mrf.mxu0
        %v1258 = vpop.f32.mrf.mxu0
        %v1259 = vadd.f32 0.0, %v1258
        %v1260 = vpop.f32.mrf.mxu0
        %1261 = vmatprep.mubr.bf16.mxu0 0
        %1262 = vmatmul.mubr.bf16.gmra.mxu0 %v1129
        %v1263 = vpop.f32.mrf.mxu0
        %v1264 = vadd.f32 0.0, %v1263
        %v1265 = vpop.f32.mrf.mxu0
        %v1266 = vpop.f32.mrf.mxu0
        %v1267 = vadd.f32 0.0, %v1266
        %v1268 = vpop.f32.mrf.mxu0
        %1269 = vmatprep.mubr.bf16.mxu0 0
        %1270 = vmatmul.mubr.bf16.gmra.mxu0 %v1132
        %v1271 = vpop.f32.mrf.mxu0
        %v1272 = vadd.f32 0.0, %v1271
        %v1273 = vpop.f32.mrf.mxu0
        %v1274 = vpop.f32.mrf.mxu0
        %v1275 = vadd.f32 0.0, %v1274
        %v1276 = vpop.f32.mrf.mxu0
        %1277 = vmatprep.mubr.bf16.mxu0 0
        %1278 = vmatmul.mubr.bf16.gmra.mxu0 %v1135
        %v1279 = vpop.f32.mrf.mxu0
        %v1280 = vadd.f32 0.0, %v1279
        %v1281 = vpop.f32.mrf.mxu0
        %v1282 = vpop.f32.mrf.mxu0
        %v1283 = vadd.f32 0.0, %v1282
        %v1284 = vpop.f32.mrf.mxu0
        %1285 = vmatprep.mubr.bf16.mxu0 0
        %1286 = vmatmul.mubr.bf16.gmra.mxu0 %v1138
        %v1287 = vpop.f32.mrf.mxu0
        %v1288 = vadd.f32 0.0, %v1287
        %v1289 = vpop.f32.mrf.mxu0
        %v1290 = vpop.f32.mrf.mxu0
        %v1291 = vadd.f32 0.0, %v1290
        %v1292 = vpop.f32.mrf.mxu0
        %1293 = vmatprep.mubr.bf16.mxu0 0
        %1294 = vmatmul.mubr.bf16.gmra.mxu0 %v1141
        %v1295 = vpop.f32.mrf.mxu0
        %v1296 = vadd.f32 0.0, %v1295
        %v1297 = vpop.f32.mrf.mxu0
        %v1298 = vpop.f32.mrf.mxu0
        %v1299 = vadd.f32 0.0, %v1298
        %v1300 = vpop.f32.mrf.mxu0
        %1301 = vmatprep.mubr.bf16.mxu0 0
        %1302 = vmatmul.mubr.bf16.gmra.mxu0 %v1144
        %v1303 = vpop.f32.mrf.mxu0
        %v1304 = vadd.f32 0.0, %v1303
        %v1305 = vpop.f32.mrf.mxu0
        %v1306 = vpop.f32.mrf.mxu0
        %v1307 = vadd.f32 0.0, %v1306
        %v1308 = vpop.f32.mrf.mxu0
        %1309 = vdwg.mxu0
        %v1310 = vadd.f32 %v1015, %v1184
        %v1311 = vadd.f32 %v1016, %v1187
        %v1312 = vadd.f32 %v1017, %v1192
        %v1313 = vadd.f32 %v1018, %v1195
        %v1314 = vadd.f32 %v1019, %v1200
        %v1315 = vadd.f32 %v1020, %v1203
        %v1316 = vadd.f32 %v1021, %v1208
        %v1317 = vadd.f32 %v1022, %v1211
        %v1318 = vadd.f32 %v1023, %v1216
        %v1319 = vadd.f32 %v1024, %v1219
        %v1320 = vadd.f32 %v1025, %v1224
        %v1321 = vadd.f32 %v1026, %v1227
        %v1322 = vadd.f32 %v1027, %v1232
        %v1323 = vadd.f32 %v1028, %v1235
        %v1324 = vadd.f32 %v1029, %v1240
        %v1325 = vadd.f32 %v1030, %v1243
        %v1326 = vadd.f32 %v1031, %v1248
        %v1327 = vadd.f32 %v1032, %v1251
        %v1328 = vadd.f32 %v1033, %v1256
        %v1329 = vadd.f32 %v1034, %v1259
        %v1330 = vadd.f32 %v1035, %v1264
        %v1331 = vadd.f32 %v1036, %v1267
        %v1332 = vadd.f32 %v1037, %v1272
        %v1333 = vadd.f32 %v1038, %v1275
        %v1334 = vadd.f32 %v1039, %v1280
        %v1335 = vadd.f32 %v1040, %v1283
        %v1336 = vadd.f32 %v1041, %v1288
        %v1337 = vadd.f32 %v1042, %v1291
        %v1338 = vadd.f32 %v1043, %v1296
        %v1339 = vadd.f32 %v1044, %v1299
        %v1340 = vadd.f32 %v1045, %v1304
        %v1341 = vadd.f32 %v1046, %v1307
        %v1342 = vld [vmem:[%s1049 + $0x1] sm:$0xff]
        %v1343 = vld [vmem:[%s1049 + $0x9] sm:$0xff]
        %v1344 = vld [vmem:[%s1049 + $0x19] sm:$0xff]
        %v1345 = vld [vmem:[%s1049 + $0x21] sm:$0xff]
        %v1346 = vld [vmem:[%s1049 + $0x31] sm:$0xff]
        %v1347 = vld [vmem:[%s1049 + $0x39] sm:$0xff]
        %v1348 = vld [vmem:[%s1049 + $0x49] sm:$0xff]
        %v1349 = vld [vmem:[%s1049 + $0x51] sm:$0xff]
        %v1350 = vld [vmem:[%s1049 + $0x61] sm:$0xff]
        %v1351 = vld [vmem:[%s1049 + $0x69] sm:$0xff]
        %v1352 = vld [vmem:[%s1049 + $0x79] sm:$0xff]
        %v1353 = vld [vmem:[%s1049 + $0x81] sm:$0xff]
        %v1354 = vld [vmem:[%s1049 + $0x91] sm:$0xff]
        %v1355 = vld [vmem:[%s1049 + $0x99] sm:$0xff]
        %v1356 = vld [vmem:[%s1049 + $0xa9] sm:$0xff]
        %v1357 = vld [vmem:[%s1049 + $0xb1] sm:$0xff]
        %v1358 = vld [vmem:[%s1049 + $0xc1] sm:$0xff]
        %v1359 = vld [vmem:[%s1049 + $0xc9] sm:$0xff]
        %v1360 = vld [vmem:[%s1049 + $0xd9] sm:$0xff]
        %v1361 = vld [vmem:[%s1049 + $0xe1] sm:$0xff]
        %v1362 = vld [vmem:[%s1049 + $0xf1] sm:$0xff]
        %v1363 = vld [vmem:[%s1049 + $0xf9] sm:$0xff]
        %v1364 = vld [vmem:[%s1049 + $0x109] sm:$0xff]
        %v1365 = vld [vmem:[%s1049 + $0x111] sm:$0xff]
        %v1366 = vld [vmem:[%s1049 + $0x121] sm:$0xff]
        %v1367 = vld [vmem:[%s1049 + $0x129] sm:$0xff]
        %v1368 = vld [vmem:[%s1049 + $0x139] sm:$0xff]
        %v1369 = vld [vmem:[%s1049 + $0x141] sm:$0xff]
        %v1370 = vld [vmem:[%s1049 + $0x151] sm:$0xff]
        %v1371 = vld [vmem:[%s1049 + $0x159] sm:$0xff]
        %v1372 = vld [vmem:[%s1049 + $0x169] sm:$0xff]
        %v1373 = vld [vmem:[%s1049 + $0x171] sm:$0xff]
        %v1374 = vpack.c.bf16 %v1343, %v1342
        %v1375 = vpack.c.bf16 %v1345, %v1344
        %v1376 = vpack.c.bf16 %v1347, %v1346
        %v1377 = vpack.c.bf16 %v1349, %v1348
        %v1378 = vpack.c.bf16 %v1351, %v1350
        %v1379 = vpack.c.bf16 %v1353, %v1352
        %v1380 = vpack.c.bf16 %v1355, %v1354
        %v1381 = vpack.c.bf16 %v1357, %v1356
        %v1382 = vpack.c.bf16 %v1359, %v1358
        %v1383 = vpack.c.bf16 %v1361, %v1360
        %v1384 = vpack.c.bf16 %v1363, %v1362
        %v1385 = vpack.c.bf16 %v1365, %v1364
        %v1386 = vpack.c.bf16 %v1367, %v1366
        %v1387 = vpack.c.bf16 %v1369, %v1368
        %v1388 = vpack.c.bf16 %v1371, %v1370
        %v1389 = vpack.c.bf16 %v1373, %v1372
        %v1391 = vsel %vm329, %v1374, 0
        %v1394 = vsel %vm329, %v1375, 0
        %v1397 = vsel %vm329, %v1376, 0
        %v1400 = vsel %vm329, %v1377, 0
        %v1403 = vsel %vm329, %v1378, 0
        %v1406 = vsel %vm329, %v1379, 0
        %v1409 = vsel %vm329, %v1380, 0
        %v1412 = vsel %vm329, %v1381, 0
        %v1415 = vsel %vm329, %v1382, 0
        %v1418 = vsel %vm329, %v1383, 0
        %v1421 = vsel %vm329, %v1384, 0
        %v1424 = vsel %vm329, %v1385, 0
        %v1427 = vsel %vm329, %v1386, 0
        %v1430 = vsel %vm329, %v1387, 0
        %v1433 = vsel %vm329, %v1388, 0
        %v1436 = vsel %vm329, %v1389, 0
        %v1439 = vsel %vm378, %v225, 0
        %1441 = vmatprep.subr.bf16.mxu0 0
        %1442 = vmatpush1.bf16.msra.mxu0 0
        %1443 = vmatprep.subr.bf16.mxu0 0
        %1444 = vmatpush1.bf16.msra.mxu0 0
        %1445 = vmatprep.subr.bf16.mxu0 0
        %1446 = vmatpush1.bf16.msra.mxu0 0
        %1447 = vmatprep.subr.bf16.mxu0 0
        %1448 = vmatpush1.bf16.msra.mxu0 0
        %1449 = vmatprep.subr.bf16.mxu0 0
        %1450 = vmatpush1.bf16.msra.mxu0 0
        %1451 = vmatprep.subr.bf16.mxu0 0
        %1452 = vmatpush1.bf16.msra.mxu0 0
        %1453 = vmatprep.subr.bf16.mxu0 0
        %1454 = vmatpush1.bf16.msra.mxu0 0
        %1455 = vmatprep.subr.bf16.mxu0 0
        %1456 = vmatpush1.bf16.msra.mxu0 %v1439
        %1457 = vmatprep.subr.bf16.mxu0 0
        %1458 = vmatpush2.bf16.msra.mxu0 0
        %1459 = vmatprep.subr.bf16.mxu0 0
        %1460 = vmatpush2.bf16.msra.mxu0 0
        %1461 = vmatprep.subr.bf16.mxu0 0
        %1462 = vmatpush2.bf16.msra.mxu0 0
        %1463 = vmatprep.subr.bf16.mxu0 0
        %1464 = vmatpush2.bf16.msra.mxu0 0
        %1465 = vmatprep.subr.bf16.mxu0 0
        %1466 = vmatpush2.bf16.msra.mxu0 0
        %1467 = vmatprep.subr.bf16.mxu0 0
        %1468 = vmatpush2.bf16.msra.mxu0 0
        %1469 = vmatprep.subr.bf16.mxu0 0
        %1470 = vmatpush2.bf16.msra.mxu0 0
        %1471 = vmatprep.subr.bf16.mxu0 0
        %1472 = vmatpush2.bf16.msra.mxu0 0
        %1473 = vmatprep.mubr.bf16.mxu0 0
        %1474 = vmatmul.mubr.bf16.gmra.mxu0 %v1391
        %v1475 = vpop.f32.mrf.mxu0
        %v1476 = vadd.f32 0.0, %v1475
        %v1477 = vpop.f32.mrf.mxu0
        %v1478 = vpop.f32.mrf.mxu0
        %v1479 = vadd.f32 0.0, %v1478
        %v1480 = vpop.f32.mrf.mxu0
        %1481 = vmatprep.mubr.bf16.mxu0 0
        %1482 = vmatmul.mubr.bf16.gmra.mxu0 %v1394
        %v1483 = vpop.f32.mrf.mxu0
        %v1484 = vadd.f32 0.0, %v1483
        %v1485 = vpop.f32.mrf.mxu0
        %v1486 = vpop.f32.mrf.mxu0
        %v1487 = vadd.f32 0.0, %v1486
        %v1488 = vpop.f32.mrf.mxu0
        %1489 = vmatprep.mubr.bf16.mxu0 0
        %1490 = vmatmul.mubr.bf16.gmra.mxu0 %v1397
        %v1491 = vpop.f32.mrf.mxu0
        %v1492 = vadd.f32 0.0, %v1491
        %v1493 = vpop.f32.mrf.mxu0
        %v1494 = vpop.f32.mrf.mxu0
        %v1495 = vadd.f32 0.0, %v1494
        %v1496 = vpop.f32.mrf.mxu0
        %1497 = vmatprep.mubr.bf16.mxu0 0
        %1498 = vmatmul.mubr.bf16.gmra.mxu0 %v1400
        %v1499 = vpop.f32.mrf.mxu0
        %v1500 = vadd.f32 0.0, %v1499
        %v1501 = vpop.f32.mrf.mxu0
        %v1502 = vpop.f32.mrf.mxu0
        %v1503 = vadd.f32 0.0, %v1502
        %v1504 = vpop.f32.mrf.mxu0
        %1505 = vmatprep.mubr.bf16.mxu0 0
        %1506 = vmatmul.mubr.bf16.gmra.mxu0 %v1403
        %v1507 = vpop.f32.mrf.mxu0
        %v1508 = vadd.f32 0.0, %v1507
        %v1509 = vpop.f32.mrf.mxu0
        %v1510 = vpop.f32.mrf.mxu0
        %v1511 = vadd.f32 0.0, %v1510
        %v1512 = vpop.f32.mrf.mxu0
        %1513 = vmatprep.mubr.bf16.mxu0 0
        %1514 = vmatmul.mubr.bf16.gmra.mxu0 %v1406
        %v1515 = vpop.f32.mrf.mxu0
        %v1516 = vadd.f32 0.0, %v1515
        %v1517 = vpop.f32.mrf.mxu0
        %v1518 = vpop.f32.mrf.mxu0
        %v1519 = vadd.f32 0.0, %v1518
        %v1520 = vpop.f32.mrf.mxu0
        %1521 = vmatprep.mubr.bf16.mxu0 0
        %1522 = vmatmul.mubr.bf16.gmra.mxu0 %v1409
        %v1523 = vpop.f32.mrf.mxu0
        %v1524 = vadd.f32 0.0, %v1523
        %v1525 = vpop.f32.mrf.mxu0
        %v1526 = vpop.f32.mrf.mxu0
        %v1527 = vadd.f32 0.0, %v1526
        %v1528 = vpop.f32.mrf.mxu0
        %1529 = vmatprep.mubr.bf16.mxu0 0
        %1530 = vmatmul.mubr.bf16.gmra.mxu0 %v1412
        %v1531 = vpop.f32.mrf.mxu0
        %v1532 = vadd.f32 0.0, %v1531
        %v1533 = vpop.f32.mrf.mxu0
        %v1534 = vpop.f32.mrf.mxu0
        %v1535 = vadd.f32 0.0, %v1534
        %v1536 = vpop.f32.mrf.mxu0
        %1537 = vmatprep.mubr.bf16.mxu0 0
        %1538 = vmatmul.mubr.bf16.gmra.mxu0 %v1415
        %v1539 = vpop.f32.mrf.mxu0
        %v1540 = vadd.f32 0.0, %v1539
        %v1541 = vpop.f32.mrf.mxu0
        %v1542 = vpop.f32.mrf.mxu0
        %v1543 = vadd.f32 0.0, %v1542
        %v1544 = vpop.f32.mrf.mxu0
        %1545 = vmatprep.mubr.bf16.mxu0 0
        %1546 = vmatmul.mubr.bf16.gmra.mxu0 %v1418
        %v1547 = vpop.f32.mrf.mxu0
        %v1548 = vadd.f32 0.0, %v1547
        %v1549 = vpop.f32.mrf.mxu0
        %v1550 = vpop.f32.mrf.mxu0
        %v1551 = vadd.f32 0.0, %v1550
        %v1552 = vpop.f32.mrf.mxu0
        %1553 = vmatprep.mubr.bf16.mxu0 0
        %1554 = vmatmul.mubr.bf16.gmra.mxu0 %v1421
        %v1555 = vpop.f32.mrf.mxu0
        %v1556 = vadd.f32 0.0, %v1555
        %v1557 = vpop.f32.mrf.mxu0
        %v1558 = vpop.f32.mrf.mxu0
        %v1559 = vadd.f32 0.0, %v1558
        %v1560 = vpop.f32.mrf.mxu0
        %1561 = vmatprep.mubr.bf16.mxu0 0
        %1562 = vmatmul.mubr.bf16.gmra.mxu0 %v1424
        %v1563 = vpop.f32.mrf.mxu0
        %v1564 = vadd.f32 0.0, %v1563
        %v1565 = vpop.f32.mrf.mxu0
        %v1566 = vpop.f32.mrf.mxu0
        %v1567 = vadd.f32 0.0, %v1566
        %v1568 = vpop.f32.mrf.mxu0
        %1569 = vmatprep.mubr.bf16.mxu0 0
        %1570 = vmatmul.mubr.bf16.gmra.mxu0 %v1427
        %v1571 = vpop.f32.mrf.mxu0
        %v1572 = vadd.f32 0.0, %v1571
        %v1573 = vpop.f32.mrf.mxu0
        %v1574 = vpop.f32.mrf.mxu0
        %v1575 = vadd.f32 0.0, %v1574
        %v1576 = vpop.f32.mrf.mxu0
        %1577 = vmatprep.mubr.bf16.mxu0 0
        %1578 = vmatmul.mubr.bf16.gmra.mxu0 %v1430
        %v1579 = vpop.f32.mrf.mxu0
        %v1580 = vadd.f32 0.0, %v1579
        %v1581 = vpop.f32.mrf.mxu0
        %v1582 = vpop.f32.mrf.mxu0
        %v1583 = vadd.f32 0.0, %v1582
        %v1584 = vpop.f32.mrf.mxu0
        %1585 = vmatprep.mubr.bf16.mxu0 0
        %1586 = vmatmul.mubr.bf16.gmra.mxu0 %v1433
        %v1587 = vpop.f32.mrf.mxu0
        %v1588 = vadd.f32 0.0, %v1587
        %v1589 = vpop.f32.mrf.mxu0
        %v1590 = vpop.f32.mrf.mxu0
        %v1591 = vadd.f32 0.0, %v1590
        %v1592 = vpop.f32.mrf.mxu0
        %1593 = vmatprep.mubr.bf16.mxu0 0
        %1594 = vmatmul.mubr.bf16.gmra.mxu0 %v1436
        %v1595 = vpop.f32.mrf.mxu0
        %v1596 = vadd.f32 0.0, %v1595
        %v1597 = vpop.f32.mrf.mxu0
        %v1598 = vpop.f32.mrf.mxu0
        %v1599 = vadd.f32 0.0, %v1598
        %v1600 = vpop.f32.mrf.mxu0
        %1601 = vdwg.mxu0
        %v1602 = vadd.f32 %v1310, %v1476
        %v1603 = vadd.f32 %v1311, %v1479
        %v1604 = vadd.f32 %v1312, %v1484
        %v1605 = vadd.f32 %v1313, %v1487
        %v1606 = vadd.f32 %v1314, %v1492
        %v1607 = vadd.f32 %v1315, %v1495
        %v1608 = vadd.f32 %v1316, %v1500
        %v1609 = vadd.f32 %v1317, %v1503
        %v1610 = vadd.f32 %v1318, %v1508
        %v1611 = vadd.f32 %v1319, %v1511
        %v1612 = vadd.f32 %v1320, %v1516
        %v1613 = vadd.f32 %v1321, %v1519
        %v1614 = vadd.f32 %v1322, %v1524
        %v1615 = vadd.f32 %v1323, %v1527
        %v1616 = vadd.f32 %v1324, %v1532
        %v1617 = vadd.f32 %v1325, %v1535
        %v1618 = vadd.f32 %v1326, %v1540
        %v1619 = vadd.f32 %v1327, %v1543
        %v1620 = vadd.f32 %v1328, %v1548
        %v1621 = vadd.f32 %v1329, %v1551
        %v1622 = vadd.f32 %v1330, %v1556
        %v1623 = vadd.f32 %v1331, %v1559
        %v1624 = vadd.f32 %v1332, %v1564
        %v1625 = vadd.f32 %v1333, %v1567
        %v1626 = vadd.f32 %v1334, %v1572
        %v1627 = vadd.f32 %v1335, %v1575
        %v1628 = vadd.f32 %v1336, %v1580
        %v1629 = vadd.f32 %v1337, %v1583
        %v1630 = vadd.f32 %v1338, %v1588
        %v1631 = vadd.f32 %v1339, %v1591
        %v1632 = vadd.f32 %v1340, %v1596
        %v1633 = vadd.f32 %v1341, %v1599
        %v1634 = vld [vmem:[%s1049 + $0x2] sm:$0xff]
        %v1635 = vld [vmem:[%s1049 + $0xa] sm:$0xff]
        %v1636 = vld [vmem:[%s1049 + $0x1a] sm:$0xff]
        %v1637 = vld [vmem:[%s1049 + $0x22] sm:$0xff]
        %v1638 = vld [vmem:[%s1049 + $0x32] sm:$0xff]
        %v1639 = vld [vmem:[%s1049 + $0x3a] sm:$0xff]
        %v1640 = vld [vmem:[%s1049 + $0x4a] sm:$0xff]
        %v1641 = vld [vmem:[%s1049 + $0x52] sm:$0xff]
        %v1642 = vld [vmem:[%s1049 + $0x62] sm:$0xff]
        %v1643 = vld [vmem:[%s1049 + $0x6a] sm:$0xff]
        %v1644 = vld [vmem:[%s1049 + $0x7a] sm:$0xff]
        %v1645 = vld [vmem:[%s1049 + $0x82] sm:$0xff]
        %v1646 = vld [vmem:[%s1049 + $0x92] sm:$0xff]
        %v1647 = vld [vmem:[%s1049 + $0x9a] sm:$0xff]
        %v1648 = vld [vmem:[%s1049 + $0xaa] sm:$0xff]
        %v1649 = vld [vmem:[%s1049 + $0xb2] sm:$0xff]
        %v1650 = vld [vmem:[%s1049 + $0xc2] sm:$0xff]
        %v1651 = vld [vmem:[%s1049 + $0xca] sm:$0xff]
        %v1652 = vld [vmem:[%s1049 + $0xda] sm:$0xff]
        %v1653 = vld [vmem:[%s1049 + $0xe2] sm:$0xff]
        %v1654 = vld [vmem:[%s1049 + $0xf2] sm:$0xff]
        %v1655 = vld [vmem:[%s1049 + $0xfa] sm:$0xff]
        %v1656 = vld [vmem:[%s1049 + $0x10a] sm:$0xff]
        %v1657 = vld [vmem:[%s1049 + $0x112] sm:$0xff]
        %v1658 = vld [vmem:[%s1049 + $0x122] sm:$0xff]
        %v1659 = vld [vmem:[%s1049 + $0x12a] sm:$0xff]
        %v1660 = vld [vmem:[%s1049 + $0x13a] sm:$0xff]
        %v1661 = vld [vmem:[%s1049 + $0x142] sm:$0xff]
        %v1662 = vld [vmem:[%s1049 + $0x152] sm:$0xff]
        %v1663 = vld [vmem:[%s1049 + $0x15a] sm:$0xff]
        %v1664 = vld [vmem:[%s1049 + $0x16a] sm:$0xff]
        %v1665 = vld [vmem:[%s1049 + $0x172] sm:$0xff]
        %v1666 = vpack.c.bf16 %v1635, %v1634
        %v1667 = vpack.c.bf16 %v1637, %v1636
        %v1668 = vpack.c.bf16 %v1639, %v1638
        %v1669 = vpack.c.bf16 %v1641, %v1640
        %v1670 = vpack.c.bf16 %v1643, %v1642
        %v1671 = vpack.c.bf16 %v1645, %v1644
        %v1672 = vpack.c.bf16 %v1647, %v1646
        %v1673 = vpack.c.bf16 %v1649, %v1648
        %v1674 = vpack.c.bf16 %v1651, %v1650
        %v1675 = vpack.c.bf16 %v1653, %v1652
        %v1676 = vpack.c.bf16 %v1655, %v1654
        %v1677 = vpack.c.bf16 %v1657, %v1656
        %v1678 = vpack.c.bf16 %v1659, %v1658
        %v1679 = vpack.c.bf16 %v1661, %v1660
        %v1680 = vpack.c.bf16 %v1663, %v1662
        %v1681 = vpack.c.bf16 %v1665, %v1664
        %v1683 = vsel %vm329, %v1666, 0
        %v1686 = vsel %vm329, %v1667, 0
        %v1689 = vsel %vm329, %v1668, 0
        %v1692 = vsel %vm329, %v1669, 0
        %v1695 = vsel %vm329, %v1670, 0
        %v1698 = vsel %vm329, %v1671, 0
        %v1701 = vsel %vm329, %v1672, 0
        %v1704 = vsel %vm329, %v1673, 0
        %v1707 = vsel %vm329, %v1674, 0
        %v1710 = vsel %vm329, %v1675, 0
        %v1713 = vsel %vm329, %v1676, 0
        %v1716 = vsel %vm329, %v1677, 0
        %v1719 = vsel %vm329, %v1678, 0
        %v1722 = vsel %vm329, %v1679, 0
        %v1725 = vsel %vm329, %v1680, 0
        %v1728 = vsel %vm329, %v1681, 0
        %v1731 = vsel %vm378, %v226, 0
        %1733 = vmatprep.subr.bf16.mxu0 0
        %1734 = vmatpush1.bf16.msra.mxu0 0
        %1735 = vmatprep.subr.bf16.mxu0 0
        %1736 = vmatpush1.bf16.msra.mxu0 0
        %1737 = vmatprep.subr.bf16.mxu0 0
        %1738 = vmatpush1.bf16.msra.mxu0 0
        %1739 = vmatprep.subr.bf16.mxu0 0
        %1740 = vmatpush1.bf16.msra.mxu0 0
        %1741 = vmatprep.subr.bf16.mxu0 0
        %1742 = vmatpush1.bf16.msra.mxu0 0
        %1743 = vmatprep.subr.bf16.mxu0 0
        %1744 = vmatpush1.bf16.msra.mxu0 0
        %1745 = vmatprep.subr.bf16.mxu0 0
        %1746 = vmatpush1.bf16.msra.mxu0 0
        %1747 = vmatprep.subr.bf16.mxu0 0
        %1748 = vmatpush1.bf16.msra.mxu0 %v1731
        %1749 = vmatprep.subr.bf16.mxu0 0
        %1750 = vmatpush2.bf16.msra.mxu0 0
        %1751 = vmatprep.subr.bf16.mxu0 0
        %1752 = vmatpush2.bf16.msra.mxu0 0
        %1753 = vmatprep.subr.bf16.mxu0 0
        %1754 = vmatpush2.bf16.msra.mxu0 0
        %1755 = vmatprep.subr.bf16.mxu0 0
        %1756 = vmatpush2.bf16.msra.mxu0 0
        %1757 = vmatprep.subr.bf16.mxu0 0
        %1758 = vmatpush2.bf16.msra.mxu0 0
        %1759 = vmatprep.subr.bf16.mxu0 0
        %1760 = vmatpush2.bf16.msra.mxu0 0
        %1761 = vmatprep.subr.bf16.mxu0 0
        %1762 = vmatpush2.bf16.msra.mxu0 0
        %1763 = vmatprep.subr.bf16.mxu0 0
        %1764 = vmatpush2.bf16.msra.mxu0 0
        %1765 = vmatprep.mubr.bf16.mxu0 0
        %1766 = vmatmul.mubr.bf16.gmra.mxu0 %v1683
        %v1767 = vpop.f32.mrf.mxu0
        %v1768 = vadd.f32 0.0, %v1767
        %v1769 = vpop.f32.mrf.mxu0
        %v1770 = vpop.f32.mrf.mxu0
        %v1771 = vadd.f32 0.0, %v1770
        %v1772 = vpop.f32.mrf.mxu0
        %1773 = vmatprep.mubr.bf16.mxu0 0
        %1774 = vmatmul.mubr.bf16.gmra.mxu0 %v1686
        %v1775 = vpop.f32.mrf.mxu0
        %v1776 = vadd.f32 0.0, %v1775
        %v1777 = vpop.f32.mrf.mxu0
        %v1778 = vpop.f32.mrf.mxu0
        %v1779 = vadd.f32 0.0, %v1778
        %v1780 = vpop.f32.mrf.mxu0
        %1781 = vmatprep.mubr.bf16.mxu0 0
        %1782 = vmatmul.mubr.bf16.gmra.mxu0 %v1689
        %v1783 = vpop.f32.mrf.mxu0
        %v1784 = vadd.f32 0.0, %v1783
        %v1785 = vpop.f32.mrf.mxu0
        %v1786 = vpop.f32.mrf.mxu0
        %v1787 = vadd.f32 0.0, %v1786
        %v1788 = vpop.f32.mrf.mxu0
        %1789 = vmatprep.mubr.bf16.mxu0 0
        %1790 = vmatmul.mubr.bf16.gmra.mxu0 %v1692
        %v1791 = vpop.f32.mrf.mxu0
        %v1792 = vadd.f32 0.0, %v1791
        %v1793 = vpop.f32.mrf.mxu0
        %v1794 = vpop.f32.mrf.mxu0
        %v1795 = vadd.f32 0.0, %v1794
        %v1796 = vpop.f32.mrf.mxu0
        %1797 = vmatprep.mubr.bf16.mxu0 0
        %1798 = vmatmul.mubr.bf16.gmra.mxu0 %v1695
        %v1799 = vpop.f32.mrf.mxu0
        %v1800 = vadd.f32 0.0, %v1799
        %v1801 = vpop.f32.mrf.mxu0
        %v1802 = vpop.f32.mrf.mxu0
        %v1803 = vadd.f32 0.0, %v1802
        %v1804 = vpop.f32.mrf.mxu0
        %1805 = vmatprep.mubr.bf16.mxu0 0
        %1806 = vmatmul.mubr.bf16.gmra.mxu0 %v1698
        %v1807 = vpop.f32.mrf.mxu0
        %v1808 = vadd.f32 0.0, %v1807
        %v1809 = vpop.f32.mrf.mxu0
        %v1810 = vpop.f32.mrf.mxu0
        %v1811 = vadd.f32 0.0, %v1810
        %v1812 = vpop.f32.mrf.mxu0
        %1813 = vmatprep.mubr.bf16.mxu0 0
        %1814 = vmatmul.mubr.bf16.gmra.mxu0 %v1701
        %v1815 = vpop.f32.mrf.mxu0
        %v1816 = vadd.f32 0.0, %v1815
        %v1817 = vpop.f32.mrf.mxu0
        %v1818 = vpop.f32.mrf.mxu0
        %v1819 = vadd.f32 0.0, %v1818
        %v1820 = vpop.f32.mrf.mxu0
        %1821 = vmatprep.mubr.bf16.mxu0 0
        %1822 = vmatmul.mubr.bf16.gmra.mxu0 %v1704
        %v1823 = vpop.f32.mrf.mxu0
        %v1824 = vadd.f32 0.0, %v1823
        %v1825 = vpop.f32.mrf.mxu0
        %v1826 = vpop.f32.mrf.mxu0
        %v1827 = vadd.f32 0.0, %v1826
        %v1828 = vpop.f32.mrf.mxu0
        %1829 = vmatprep.mubr.bf16.mxu0 0
        %1830 = vmatmul.mubr.bf16.gmra.mxu0 %v1707
        %v1831 = vpop.f32.mrf.mxu0
        %v1832 = vadd.f32 0.0, %v1831
        %v1833 = vpop.f32.mrf.mxu0
        %v1834 = vpop.f32.mrf.mxu0
        %v1835 = vadd.f32 0.0, %v1834
        %v1836 = vpop.f32.mrf.mxu0
        %1837 = vmatprep.mubr.bf16.mxu0 0
        %1838 = vmatmul.mubr.bf16.gmra.mxu0 %v1710
        %v1839 = vpop.f32.mrf.mxu0
        %v1840 = vadd.f32 0.0, %v1839
        %v1841 = vpop.f32.mrf.mxu0
        %v1842 = vpop.f32.mrf.mxu0
        %v1843 = vadd.f32 0.0, %v1842
        %v1844 = vpop.f32.mrf.mxu0
        %1845 = vmatprep.mubr.bf16.mxu0 0
        %1846 = vmatmul.mubr.bf16.gmra.mxu0 %v1713
        %v1847 = vpop.f32.mrf.mxu0
        %v1848 = vadd.f32 0.0, %v1847
        %v1849 = vpop.f32.mrf.mxu0
        %v1850 = vpop.f32.mrf.mxu0
        %v1851 = vadd.f32 0.0, %v1850
        %v1852 = vpop.f32.mrf.mxu0
        %1853 = vmatprep.mubr.bf16.mxu0 0
        %1854 = vmatmul.mubr.bf16.gmra.mxu0 %v1716
        %v1855 = vpop.f32.mrf.mxu0
        %v1856 = vadd.f32 0.0, %v1855
        %v1857 = vpop.f32.mrf.mxu0
        %v1858 = vpop.f32.mrf.mxu0
        %v1859 = vadd.f32 0.0, %v1858
        %v1860 = vpop.f32.mrf.mxu0
        %1861 = vmatprep.mubr.bf16.mxu0 0
        %1862 = vmatmul.mubr.bf16.gmra.mxu0 %v1719
        %v1863 = vpop.f32.mrf.mxu0
        %v1864 = vadd.f32 0.0, %v1863
        %v1865 = vpop.f32.mrf.mxu0
        %v1866 = vpop.f32.mrf.mxu0
        %v1867 = vadd.f32 0.0, %v1866
        %v1868 = vpop.f32.mrf.mxu0
        %1869 = vmatprep.mubr.bf16.mxu0 0
        %1870 = vmatmul.mubr.bf16.gmra.mxu0 %v1722
        %v1871 = vpop.f32.mrf.mxu0
        %v1872 = vadd.f32 0.0, %v1871
        %v1873 = vpop.f32.mrf.mxu0
        %v1874 = vpop.f32.mrf.mxu0
        %v1875 = vadd.f32 0.0, %v1874
        %v1876 = vpop.f32.mrf.mxu0
        %1877 = vmatprep.mubr.bf16.mxu0 0
        %1878 = vmatmul.mubr.bf16.gmra.mxu0 %v1725
        %v1879 = vpop.f32.mrf.mxu0
        %v1880 = vadd.f32 0.0, %v1879
        %v1881 = vpop.f32.mrf.mxu0
        %v1882 = vpop.f32.mrf.mxu0
        %v1883 = vadd.f32 0.0, %v1882
        %v1884 = vpop.f32.mrf.mxu0
        %1885 = vmatprep.mubr.bf16.mxu0 0
        %1886 = vmatmul.mubr.bf16.gmra.mxu0 %v1728
        %v1887 = vpop.f32.mrf.mxu0
        %v1888 = vadd.f32 0.0, %v1887
        %v1889 = vpop.f32.mrf.mxu0
        %v1890 = vpop.f32.mrf.mxu0
        %v1891 = vadd.f32 0.0, %v1890
        %v1892 = vpop.f32.mrf.mxu0
        %1893 = vdwg.mxu0
        %v1894 = vadd.f32 %v1602, %v1768
        %v1895 = vadd.f32 %v1603, %v1771
        %v1896 = vadd.f32 %v1604, %v1776
        %v1897 = vadd.f32 %v1605, %v1779
        %v1898 = vadd.f32 %v1606, %v1784
        %v1899 = vadd.f32 %v1607, %v1787
        %v1900 = vadd.f32 %v1608, %v1792
        %v1901 = vadd.f32 %v1609, %v1795
        %v1902 = vadd.f32 %v1610, %v1800
        %v1903 = vadd.f32 %v1611, %v1803
        %v1904 = vadd.f32 %v1612, %v1808
        %v1905 = vadd.f32 %v1613, %v1811
        %v1906 = vadd.f32 %v1614, %v1816
        %v1907 = vadd.f32 %v1615, %v1819
        %v1908 = vadd.f32 %v1616, %v1824
        %v1909 = vadd.f32 %v1617, %v1827
        %v1910 = vadd.f32 %v1618, %v1832
        %v1911 = vadd.f32 %v1619, %v1835
        %v1912 = vadd.f32 %v1620, %v1840
        %v1913 = vadd.f32 %v1621, %v1843
        %v1914 = vadd.f32 %v1622, %v1848
        %v1915 = vadd.f32 %v1623, %v1851
        %v1916 = vadd.f32 %v1624, %v1856
        %v1917 = vadd.f32 %v1625, %v1859
        %v1918 = vadd.f32 %v1626, %v1864
        %v1919 = vadd.f32 %v1627, %v1867
        %v1920 = vadd.f32 %v1628, %v1872
        %v1921 = vadd.f32 %v1629, %v1875
        %v1922 = vadd.f32 %v1630, %v1880
        %v1923 = vadd.f32 %v1631, %v1883
        %v1924 = vadd.f32 %v1632, %v1888
        %v1925 = vadd.f32 %v1633, %v1891
        %s1926 = sadd.s32 %s230, 2
        %s1927 = smul.u32 %s1926, 24
        %s1928 = scalar_lea.vmem %s182, %s1927
        %v1929 = vld [vmem:[%s1928] sm:$0xff]
        %v1930 = vld [vmem:[%s1928 + $0x8] sm:$0xff]
        %v1931 = vld [vmem:[%s1928 + $0x18] sm:$0xff]
        %v1932 = vld [vmem:[%s1928 + $0x20] sm:$0xff]
        %v1933 = vld [vmem:[%s1928 + $0x30] sm:$0xff]
        %v1934 = vld [vmem:[%s1928 + $0x38] sm:$0xff]
        %v1935 = vld [vmem:[%s1928 + $0x48] sm:$0xff]
        %v1936 = vld [vmem:[%s1928 + $0x50] sm:$0xff]
        %v1937 = vld [vmem:[%s1928 + $0x60] sm:$0xff]
        %v1938 = vld [vmem:[%s1928 + $0x68] sm:$0xff]
        %v1939 = vld [vmem:[%s1928 + $0x78] sm:$0xff]
        %v1940 = vld [vmem:[%s1928 + $0x80] sm:$0xff]
        %v1941 = vld [vmem:[%s1928 + $0x90] sm:$0xff]
        %v1942 = vld [vmem:[%s1928 + $0x98] sm:$0xff]
        %v1943 = vld [vmem:[%s1928 + $0xa8] sm:$0xff]
        %v1944 = vld [vmem:[%s1928 + $0xb0] sm:$0xff]
        %v1945 = vld [vmem:[%s1928 + $0xc0] sm:$0xff]
        %v1946 = vld [vmem:[%s1928 + $0xc8] sm:$0xff]
        %v1947 = vld [vmem:[%s1928 + $0xd8] sm:$0xff]
        %v1948 = vld [vmem:[%s1928 + $0xe0] sm:$0xff]
        %v1949 = vld [vmem:[%s1928 + $0xf0] sm:$0xff]
        %v1950 = vld [vmem:[%s1928 + $0xf8] sm:$0xff]
        %v1951 = vld [vmem:[%s1928 + $0x108] sm:$0xff]
        %v1952 = vld [vmem:[%s1928 + $0x110] sm:$0xff]
        %v1953 = vld [vmem:[%s1928 + $0x120] sm:$0xff]
        %v1954 = vld [vmem:[%s1928 + $0x128] sm:$0xff]
        %v1955 = vld [vmem:[%s1928 + $0x138] sm:$0xff]
        %v1956 = vld [vmem:[%s1928 + $0x140] sm:$0xff]
        %v1957 = vld [vmem:[%s1928 + $0x150] sm:$0xff]
        %v1958 = vld [vmem:[%s1928 + $0x158] sm:$0xff]
        %v1959 = vld [vmem:[%s1928 + $0x168] sm:$0xff]
        %v1960 = vld [vmem:[%s1928 + $0x170] sm:$0xff]
        %v1961 = vpack.c.bf16 %v1930, %v1929
        %v1962 = vpack.c.bf16 %v1932, %v1931
        %v1963 = vpack.c.bf16 %v1934, %v1933
        %v1964 = vpack.c.bf16 %v1936, %v1935
        %v1965 = vpack.c.bf16 %v1938, %v1937
        %v1966 = vpack.c.bf16 %v1940, %v1939
        %v1967 = vpack.c.bf16 %v1942, %v1941
        %v1968 = vpack.c.bf16 %v1944, %v1943
        %v1969 = vpack.c.bf16 %v1946, %v1945
        %v1970 = vpack.c.bf16 %v1948, %v1947
        %v1971 = vpack.c.bf16 %v1950, %v1949
        %v1972 = vpack.c.bf16 %v1952, %v1951
        %v1973 = vpack.c.bf16 %v1954, %v1953
        %v1974 = vpack.c.bf16 %v1956, %v1955
        %v1975 = vpack.c.bf16 %v1958, %v1957
        %v1976 = vpack.c.bf16 %v1960, %v1959
        %v1978 = vsel %vm329, %v1961, 0
        %v1981 = vsel %vm329, %v1962, 0
        %v1984 = vsel %vm329, %v1963, 0
        %v1987 = vsel %vm329, %v1964, 0
        %v1990 = vsel %vm329, %v1965, 0
        %v1993 = vsel %vm329, %v1966, 0
        %v1996 = vsel %vm329, %v1967, 0
        %v1999 = vsel %vm329, %v1968, 0
        %v2002 = vsel %vm329, %v1969, 0
        %v2005 = vsel %vm329, %v1970, 0
        %v2008 = vsel %vm329, %v1971, 0
        %v2011 = vsel %vm329, %v1972, 0
        %v2014 = vsel %vm329, %v1973, 0
        %v2017 = vsel %vm329, %v1974, 0
        %v2020 = vsel %vm329, %v1975, 0
        %v2023 = vsel %vm329, %v1976, 0
        %v2026 = vsel %vm378, %v227, 0
        %2028 = vmatprep.subr.bf16.mxu0 0
        %2029 = vmatpush1.bf16.msra.mxu0 0
        %2030 = vmatprep.subr.bf16.mxu0 0
        %2031 = vmatpush1.bf16.msra.mxu0 0
        %2032 = vmatprep.subr.bf16.mxu0 0
        %2033 = vmatpush1.bf16.msra.mxu0 0
        %2034 = vmatprep.subr.bf16.mxu0 0
        %2035 = vmatpush1.bf16.msra.mxu0 0
        %2036 = vmatprep.subr.bf16.mxu0 0
        %2037 = vmatpush1.bf16.msra.mxu0 0
        %2038 = vmatprep.subr.bf16.mxu0 0
        %2039 = vmatpush1.bf16.msra.mxu0 0
        %2040 = vmatprep.subr.bf16.mxu0 0
        %2041 = vmatpush1.bf16.msra.mxu0 0
        %2042 = vmatprep.subr.bf16.mxu0 0
        %2043 = vmatpush1.bf16.msra.mxu0 %v2026
        %2044 = vmatprep.subr.bf16.mxu0 0
        %2045 = vmatpush2.bf16.msra.mxu0 0
        %2046 = vmatprep.subr.bf16.mxu0 0
        %2047 = vmatpush2.bf16.msra.mxu0 0
        %2048 = vmatprep.subr.bf16.mxu0 0
        %2049 = vmatpush2.bf16.msra.mxu0 0
        %2050 = vmatprep.subr.bf16.mxu0 0
        %2051 = vmatpush2.bf16.msra.mxu0 0
        %2052 = vmatprep.subr.bf16.mxu0 0
        %2053 = vmatpush2.bf16.msra.mxu0 0
        %2054 = vmatprep.subr.bf16.mxu0 0
        %2055 = vmatpush2.bf16.msra.mxu0 0
        %2056 = vmatprep.subr.bf16.mxu0 0
        %2057 = vmatpush2.bf16.msra.mxu0 0
        %2058 = vmatprep.subr.bf16.mxu0 0
        %2059 = vmatpush2.bf16.msra.mxu0 0
        %2060 = vmatprep.mubr.bf16.mxu0 0
        %2061 = vmatmul.mubr.bf16.gmra.mxu0 %v1978
        %v2062 = vpop.f32.mrf.mxu0
        %v2063 = vadd.f32 0.0, %v2062
        %v2064 = vpop.f32.mrf.mxu0
        %v2065 = vpop.f32.mrf.mxu0
        %v2066 = vadd.f32 0.0, %v2065
        %v2067 = vpop.f32.mrf.mxu0
        %2068 = vmatprep.mubr.bf16.mxu0 0
        %2069 = vmatmul.mubr.bf16.gmra.mxu0 %v1981
        %v2070 = vpop.f32.mrf.mxu0
        %v2071 = vadd.f32 0.0, %v2070
        %v2072 = vpop.f32.mrf.mxu0
        %v2073 = vpop.f32.mrf.mxu0
        %v2074 = vadd.f32 0.0, %v2073
        %v2075 = vpop.f32.mrf.mxu0
        %2076 = vmatprep.mubr.bf16.mxu0 0
        %2077 = vmatmul.mubr.bf16.gmra.mxu0 %v1984
        %v2078 = vpop.f32.mrf.mxu0
        %v2079 = vadd.f32 0.0, %v2078
        %v2080 = vpop.f32.mrf.mxu0
        %v2081 = vpop.f32.mrf.mxu0
        %v2082 = vadd.f32 0.0, %v2081
        %v2083 = vpop.f32.mrf.mxu0
        %2084 = vmatprep.mubr.bf16.mxu0 0
        %2085 = vmatmul.mubr.bf16.gmra.mxu0 %v1987
        %v2086 = vpop.f32.mrf.mxu0
        %v2087 = vadd.f32 0.0, %v2086
        %v2088 = vpop.f32.mrf.mxu0
        %v2089 = vpop.f32.mrf.mxu0
        %v2090 = vadd.f32 0.0, %v2089
        %v2091 = vpop.f32.mrf.mxu0
        %2092 = vmatprep.mubr.bf16.mxu0 0
        %2093 = vmatmul.mubr.bf16.gmra.mxu0 %v1990
        %v2094 = vpop.f32.mrf.mxu0
        %v2095 = vadd.f32 0.0, %v2094
        %v2096 = vpop.f32.mrf.mxu0
        %v2097 = vpop.f32.mrf.mxu0
        %v2098 = vadd.f32 0.0, %v2097
        %v2099 = vpop.f32.mrf.mxu0
        %2100 = vmatprep.mubr.bf16.mxu0 0
        %2101 = vmatmul.mubr.bf16.gmra.mxu0 %v1993
        %v2102 = vpop.f32.mrf.mxu0
        %v2103 = vadd.f32 0.0, %v2102
        %v2104 = vpop.f32.mrf.mxu0
        %v2105 = vpop.f32.mrf.mxu0
        %v2106 = vadd.f32 0.0, %v2105
        %v2107 = vpop.f32.mrf.mxu0
        %2108 = vmatprep.mubr.bf16.mxu0 0
        %2109 = vmatmul.mubr.bf16.gmra.mxu0 %v1996
        %v2110 = vpop.f32.mrf.mxu0
        %v2111 = vadd.f32 0.0, %v2110
        %v2112 = vpop.f32.mrf.mxu0
        %v2113 = vpop.f32.mrf.mxu0
        %v2114 = vadd.f32 0.0, %v2113
        %v2115 = vpop.f32.mrf.mxu0
        %2116 = vmatprep.mubr.bf16.mxu0 0
        %2117 = vmatmul.mubr.bf16.gmra.mxu0 %v1999
        %v2118 = vpop.f32.mrf.mxu0
        %v2119 = vadd.f32 0.0, %v2118
        %v2120 = vpop.f32.mrf.mxu0
        %v2121 = vpop.f32.mrf.mxu0
        %v2122 = vadd.f32 0.0, %v2121
        %v2123 = vpop.f32.mrf.mxu0
        %2124 = vmatprep.mubr.bf16.mxu0 0
        %2125 = vmatmul.mubr.bf16.gmra.mxu0 %v2002
        %v2126 = vpop.f32.mrf.mxu0
        %v2127 = vadd.f32 0.0, %v2126
        %v2128 = vpop.f32.mrf.mxu0
        %v2129 = vpop.f32.mrf.mxu0
        %v2130 = vadd.f32 0.0, %v2129
        %v2131 = vpop.f32.mrf.mxu0
        %2132 = vmatprep.mubr.bf16.mxu0 0
        %2133 = vmatmul.mubr.bf16.gmra.mxu0 %v2005
        %v2134 = vpop.f32.mrf.mxu0
        %v2135 = vadd.f32 0.0, %v2134
        %v2136 = vpop.f32.mrf.mxu0
        %v2137 = vpop.f32.mrf.mxu0
        %v2138 = vadd.f32 0.0, %v2137
        %v2139 = vpop.f32.mrf.mxu0
        %2140 = vmatprep.mubr.bf16.mxu0 0
        %2141 = vmatmul.mubr.bf16.gmra.mxu0 %v2008
        %v2142 = vpop.f32.mrf.mxu0
        %v2143 = vadd.f32 0.0, %v2142
        %v2144 = vpop.f32.mrf.mxu0
        %v2145 = vpop.f32.mrf.mxu0
        %v2146 = vadd.f32 0.0, %v2145
        %v2147 = vpop.f32.mrf.mxu0
        %2148 = vmatprep.mubr.bf16.mxu0 0
        %2149 = vmatmul.mubr.bf16.gmra.mxu0 %v2011
        %v2150 = vpop.f32.mrf.mxu0
        %v2151 = vadd.f32 0.0, %v2150
        %v2152 = vpop.f32.mrf.mxu0
        %v2153 = vpop.f32.mrf.mxu0
        %v2154 = vadd.f32 0.0, %v2153
        %v2155 = vpop.f32.mrf.mxu0
        %2156 = vmatprep.mubr.bf16.mxu0 0
        %2157 = vmatmul.mubr.bf16.gmra.mxu0 %v2014
        %v2158 = vpop.f32.mrf.mxu0
        %v2159 = vadd.f32 0.0, %v2158
        %v2160 = vpop.f32.mrf.mxu0
        %v2161 = vpop.f32.mrf.mxu0
        %v2162 = vadd.f32 0.0, %v2161
        %v2163 = vpop.f32.mrf.mxu0
        %2164 = vmatprep.mubr.bf16.mxu0 0
        %2165 = vmatmul.mubr.bf16.gmra.mxu0 %v2017
        %v2166 = vpop.f32.mrf.mxu0
        %v2167 = vadd.f32 0.0, %v2166
        %v2168 = vpop.f32.mrf.mxu0
        %v2169 = vpop.f32.mrf.mxu0
        %v2170 = vadd.f32 0.0, %v2169
        %v2171 = vpop.f32.mrf.mxu0
        %2172 = vmatprep.mubr.bf16.mxu0 0
        %2173 = vmatmul.mubr.bf16.gmra.mxu0 %v2020
        %v2174 = vpop.f32.mrf.mxu0
        %v2175 = vadd.f32 0.0, %v2174
        %v2176 = vpop.f32.mrf.mxu0
        %v2177 = vpop.f32.mrf.mxu0
        %v2178 = vadd.f32 0.0, %v2177
        %v2179 = vpop.f32.mrf.mxu0
        %2180 = vmatprep.mubr.bf16.mxu0 0
        %2181 = vmatmul.mubr.bf16.gmra.mxu0 %v2023
        %v2182 = vpop.f32.mrf.mxu0
        %v2183 = vadd.f32 0.0, %v2182
        %v2184 = vpop.f32.mrf.mxu0
        %v2185 = vpop.f32.mrf.mxu0
        %v2186 = vadd.f32 0.0, %v2185
        %v2187 = vpop.f32.mrf.mxu0
        %2188 = vdwg.mxu0
        %v2189 = vadd.f32 %v1894, %v2063
        %v2190 = vadd.f32 %v1895, %v2066
        %v2191 = vadd.f32 %v1896, %v2071
        %v2192 = vadd.f32 %v1897, %v2074
        %v2193 = vadd.f32 %v1898, %v2079
        %v2194 = vadd.f32 %v1899, %v2082
        %v2195 = vadd.f32 %v1900, %v2087
        %v2196 = vadd.f32 %v1901, %v2090
        %v2197 = vadd.f32 %v1902, %v2095
        %v2198 = vadd.f32 %v1903, %v2098
        %v2199 = vadd.f32 %v1904, %v2103
        %v2200 = vadd.f32 %v1905, %v2106
        %v2201 = vadd.f32 %v1906, %v2111
        %v2202 = vadd.f32 %v1907, %v2114
        %v2203 = vadd.f32 %v1908, %v2119
        %v2204 = vadd.f32 %v1909, %v2122
        %v2205 = vadd.f32 %v1910, %v2127
        %v2206 = vadd.f32 %v1911, %v2130
        %v2207 = vadd.f32 %v1912, %v2135
        %v2208 = vadd.f32 %v1913, %v2138
        %v2209 = vadd.f32 %v1914, %v2143
        %v2210 = vadd.f32 %v1915, %v2146
        %v2211 = vadd.f32 %v1916, %v2151
        %v2212 = vadd.f32 %v1917, %v2154
        %v2213 = vadd.f32 %v1918, %v2159
        %v2214 = vadd.f32 %v1919, %v2162
        %v2215 = vadd.f32 %v1920, %v2167
        %v2216 = vadd.f32 %v1921, %v2170
        %v2217 = vadd.f32 %v1922, %v2175
        %v2218 = vadd.f32 %v1923, %v2178
        %v2219 = vadd.f32 %v1924, %v2183
        %v2220 = vadd.f32 %v1925, %v2186
        %v2221 = vld [vmem:[%s1928 + $0x1] sm:$0xff]
        %v2222 = vld [vmem:[%s1928 + $0x9] sm:$0xff]
        %v2223 = vld [vmem:[%s1928 + $0x19] sm:$0xff]
        %v2224 = vld [vmem:[%s1928 + $0x21] sm:$0xff]
        %v2225 = vld [vmem:[%s1928 + $0x31] sm:$0xff]
        %v2226 = vld [vmem:[%s1928 + $0x39] sm:$0xff]
        %v2227 = vld [vmem:[%s1928 + $0x49] sm:$0xff]
        %v2228 = vld [vmem:[%s1928 + $0x51] sm:$0xff]
        %v2229 = vld [vmem:[%s1928 + $0x61] sm:$0xff]
        %v2230 = vld [vmem:[%s1928 + $0x69] sm:$0xff]
        %v2231 = vld [vmem:[%s1928 + $0x79] sm:$0xff]
        %v2232 = vld [vmem:[%s1928 + $0x81] sm:$0xff]
        %v2233 = vld [vmem:[%s1928 + $0x91] sm:$0xff]
        %v2234 = vld [vmem:[%s1928 + $0x99] sm:$0xff]
        %v2235 = vld [vmem:[%s1928 + $0xa9] sm:$0xff]
        %v2236 = vld [vmem:[%s1928 + $0xb1] sm:$0xff]
        %v2237 = vld [vmem:[%s1928 + $0xc1] sm:$0xff]
        %v2238 = vld [vmem:[%s1928 + $0xc9] sm:$0xff]
        %v2239 = vld [vmem:[%s1928 + $0xd9] sm:$0xff]
        %v2240 = vld [vmem:[%s1928 + $0xe1] sm:$0xff]
        %v2241 = vld [vmem:[%s1928 + $0xf1] sm:$0xff]
        %v2242 = vld [vmem:[%s1928 + $0xf9] sm:$0xff]
        %v2243 = vld [vmem:[%s1928 + $0x109] sm:$0xff]
        %v2244 = vld [vmem:[%s1928 + $0x111] sm:$0xff]
        %v2245 = vld [vmem:[%s1928 + $0x121] sm:$0xff]
        %v2246 = vld [vmem:[%s1928 + $0x129] sm:$0xff]
        %v2247 = vld [vmem:[%s1928 + $0x139] sm:$0xff]
        %v2248 = vld [vmem:[%s1928 + $0x141] sm:$0xff]
        %v2249 = vld [vmem:[%s1928 + $0x151] sm:$0xff]
        %v2250 = vld [vmem:[%s1928 + $0x159] sm:$0xff]
        %v2251 = vld [vmem:[%s1928 + $0x169] sm:$0xff]
        %v2252 = vld [vmem:[%s1928 + $0x171] sm:$0xff]
        %v2253 = vpack.c.bf16 %v2222, %v2221
        %v2254 = vpack.c.bf16 %v2224, %v2223
        %v2255 = vpack.c.bf16 %v2226, %v2225
        %v2256 = vpack.c.bf16 %v2228, %v2227
        %v2257 = vpack.c.bf16 %v2230, %v2229
        %v2258 = vpack.c.bf16 %v2232, %v2231
        %v2259 = vpack.c.bf16 %v2234, %v2233
        %v2260 = vpack.c.bf16 %v2236, %v2235
        %v2261 = vpack.c.bf16 %v2238, %v2237
        %v2262 = vpack.c.bf16 %v2240, %v2239
        %v2263 = vpack.c.bf16 %v2242, %v2241
        %v2264 = vpack.c.bf16 %v2244, %v2243
        %v2265 = vpack.c.bf16 %v2246, %v2245
        %v2266 = vpack.c.bf16 %v2248, %v2247
        %v2267 = vpack.c.bf16 %v2250, %v2249
        %v2268 = vpack.c.bf16 %v2252, %v2251
        %v2270 = vsel %vm329, %v2253, 0
        %v2273 = vsel %vm329, %v2254, 0
        %v2276 = vsel %vm329, %v2255, 0
        %v2279 = vsel %vm329, %v2256, 0
        %v2282 = vsel %vm329, %v2257, 0
        %v2285 = vsel %vm329, %v2258, 0
        %v2288 = vsel %vm329, %v2259, 0
        %v2291 = vsel %vm329, %v2260, 0
        %v2294 = vsel %vm329, %v2261, 0
        %v2297 = vsel %vm329, %v2262, 0
        %v2300 = vsel %vm329, %v2263, 0
        %v2303 = vsel %vm329, %v2264, 0
        %v2306 = vsel %vm329, %v2265, 0
        %v2309 = vsel %vm329, %v2266, 0
        %v2312 = vsel %vm329, %v2267, 0
        %v2315 = vsel %vm329, %v2268, 0
        %v2318 = vsel %vm378, %v228, 0
        %2320 = vmatprep.subr.bf16.mxu0 0
        %2321 = vmatpush1.bf16.msra.mxu0 0
        %2322 = vmatprep.subr.bf16.mxu0 0
        %2323 = vmatpush1.bf16.msra.mxu0 0
        %2324 = vmatprep.subr.bf16.mxu0 0
        %2325 = vmatpush1.bf16.msra.mxu0 0
        %2326 = vmatprep.subr.bf16.mxu0 0
        %2327 = vmatpush1.bf16.msra.mxu0 0
        %2328 = vmatprep.subr.bf16.mxu0 0
        %2329 = vmatpush1.bf16.msra.mxu0 0
        %2330 = vmatprep.subr.bf16.mxu0 0
        %2331 = vmatpush1.bf16.msra.mxu0 0
        %2332 = vmatprep.subr.bf16.mxu0 0
        %2333 = vmatpush1.bf16.msra.mxu0 0
        %2334 = vmatprep.subr.bf16.mxu0 0
        %2335 = vmatpush1.bf16.msra.mxu0 %v2318
        %2336 = vmatprep.subr.bf16.mxu0 0
        %2337 = vmatpush2.bf16.msra.mxu0 0
        %2338 = vmatprep.subr.bf16.mxu0 0
        %2339 = vmatpush2.bf16.msra.mxu0 0
        %2340 = vmatprep.subr.bf16.mxu0 0
        %2341 = vmatpush2.bf16.msra.mxu0 0
        %2342 = vmatprep.subr.bf16.mxu0 0
        %2343 = vmatpush2.bf16.msra.mxu0 0
        %2344 = vmatprep.subr.bf16.mxu0 0
        %2345 = vmatpush2.bf16.msra.mxu0 0
        %2346 = vmatprep.subr.bf16.mxu0 0
        %2347 = vmatpush2.bf16.msra.mxu0 0
        %2348 = vmatprep.subr.bf16.mxu0 0
        %2349 = vmatpush2.bf16.msra.mxu0 0
        %2350 = vmatprep.subr.bf16.mxu0 0
        %2351 = vmatpush2.bf16.msra.mxu0 0
        %2352 = vmatprep.mubr.bf16.mxu0 0
        %2353 = vmatmul.mubr.bf16.gmra.mxu0 %v2270
        %v2354 = vpop.f32.mrf.mxu0
        %v2355 = vadd.f32 0.0, %v2354
        %v2356 = vpop.f32.mrf.mxu0
        %v2357 = vpop.f32.mrf.mxu0
        %v2358 = vadd.f32 0.0, %v2357
        %v2359 = vpop.f32.mrf.mxu0
        %2360 = vmatprep.mubr.bf16.mxu0 0
        %2361 = vmatmul.mubr.bf16.gmra.mxu0 %v2273
        %v2362 = vpop.f32.mrf.mxu0
        %v2363 = vadd.f32 0.0, %v2362
        %v2364 = vpop.f32.mrf.mxu0
        %v2365 = vpop.f32.mrf.mxu0
        %v2366 = vadd.f32 0.0, %v2365
        %v2367 = vpop.f32.mrf.mxu0
        %2368 = vmatprep.mubr.bf16.mxu0 0
        %2369 = vmatmul.mubr.bf16.gmra.mxu0 %v2276
        %v2370 = vpop.f32.mrf.mxu0
        %v2371 = vadd.f32 0.0, %v2370
        %v2372 = vpop.f32.mrf.mxu0
        %v2373 = vpop.f32.mrf.mxu0
        %v2374 = vadd.f32 0.0, %v2373
        %v2375 = vpop.f32.mrf.mxu0
        %2376 = vmatprep.mubr.bf16.mxu0 0
        %2377 = vmatmul.mubr.bf16.gmra.mxu0 %v2279
        %v2378 = vpop.f32.mrf.mxu0
        %v2379 = vadd.f32 0.0, %v2378
        %v2380 = vpop.f32.mrf.mxu0
        %v2381 = vpop.f32.mrf.mxu0
        %v2382 = vadd.f32 0.0, %v2381
        %v2383 = vpop.f32.mrf.mxu0
        %2384 = vmatprep.mubr.bf16.mxu0 0
        %2385 = vmatmul.mubr.bf16.gmra.mxu0 %v2282
        %v2386 = vpop.f32.mrf.mxu0
        %v2387 = vadd.f32 0.0, %v2386
        %v2388 = vpop.f32.mrf.mxu0
        %v2389 = vpop.f32.mrf.mxu0
        %v2390 = vadd.f32 0.0, %v2389
        %v2391 = vpop.f32.mrf.mxu0
        %2392 = vmatprep.mubr.bf16.mxu0 0
        %2393 = vmatmul.mubr.bf16.gmra.mxu0 %v2285
        %v2394 = vpop.f32.mrf.mxu0
        %v2395 = vadd.f32 0.0, %v2394
        %v2396 = vpop.f32.mrf.mxu0
        %v2397 = vpop.f32.mrf.mxu0
        %v2398 = vadd.f32 0.0, %v2397
        %v2399 = vpop.f32.mrf.mxu0
        %2400 = vmatprep.mubr.bf16.mxu0 0
        %2401 = vmatmul.mubr.bf16.gmra.mxu0 %v2288
        %v2402 = vpop.f32.mrf.mxu0
        %v2403 = vadd.f32 0.0, %v2402
        %v2404 = vpop.f32.mrf.mxu0
        %v2405 = vpop.f32.mrf.mxu0
        %v2406 = vadd.f32 0.0, %v2405
        %v2407 = vpop.f32.mrf.mxu0
        %2408 = vmatprep.mubr.bf16.mxu0 0
        %2409 = vmatmul.mubr.bf16.gmra.mxu0 %v2291
        %v2410 = vpop.f32.mrf.mxu0
        %v2411 = vadd.f32 0.0, %v2410
        %v2412 = vpop.f32.mrf.mxu0
        %v2413 = vpop.f32.mrf.mxu0
        %v2414 = vadd.f32 0.0, %v2413
        %v2415 = vpop.f32.mrf.mxu0
        %2416 = vmatprep.mubr.bf16.mxu0 0
        %2417 = vmatmul.mubr.bf16.gmra.mxu0 %v2294
        %v2418 = vpop.f32.mrf.mxu0
        %v2419 = vadd.f32 0.0, %v2418
        %v2420 = vpop.f32.mrf.mxu0
        %v2421 = vpop.f32.mrf.mxu0
        %v2422 = vadd.f32 0.0, %v2421
        %v2423 = vpop.f32.mrf.mxu0
        %2424 = vmatprep.mubr.bf16.mxu0 0
        %2425 = vmatmul.mubr.bf16.gmra.mxu0 %v2297
        %v2426 = vpop.f32.mrf.mxu0
        %v2427 = vadd.f32 0.0, %v2426
        %v2428 = vpop.f32.mrf.mxu0
        %v2429 = vpop.f32.mrf.mxu0
        %v2430 = vadd.f32 0.0, %v2429
        %v2431 = vpop.f32.mrf.mxu0
        %2432 = vmatprep.mubr.bf16.mxu0 0
        %2433 = vmatmul.mubr.bf16.gmra.mxu0 %v2300
        %v2434 = vpop.f32.mrf.mxu0
        %v2435 = vadd.f32 0.0, %v2434
        %v2436 = vpop.f32.mrf.mxu0
        %v2437 = vpop.f32.mrf.mxu0
        %v2438 = vadd.f32 0.0, %v2437
        %v2439 = vpop.f32.mrf.mxu0
        %2440 = vmatprep.mubr.bf16.mxu0 0
        %2441 = vmatmul.mubr.bf16.gmra.mxu0 %v2303
        %v2442 = vpop.f32.mrf.mxu0
        %v2443 = vadd.f32 0.0, %v2442
        %v2444 = vpop.f32.mrf.mxu0
        %v2445 = vpop.f32.mrf.mxu0
        %v2446 = vadd.f32 0.0, %v2445
        %v2447 = vpop.f32.mrf.mxu0
        %2448 = vmatprep.mubr.bf16.mxu0 0
        %2449 = vmatmul.mubr.bf16.gmra.mxu0 %v2306
        %v2450 = vpop.f32.mrf.mxu0
        %v2451 = vadd.f32 0.0, %v2450
        %v2452 = vpop.f32.mrf.mxu0
        %v2453 = vpop.f32.mrf.mxu0
        %v2454 = vadd.f32 0.0, %v2453
        %v2455 = vpop.f32.mrf.mxu0
        %2456 = vmatprep.mubr.bf16.mxu0 0
        %2457 = vmatmul.mubr.bf16.gmra.mxu0 %v2309
        %v2458 = vpop.f32.mrf.mxu0
        %v2459 = vadd.f32 0.0, %v2458
        %v2460 = vpop.f32.mrf.mxu0
        %v2461 = vpop.f32.mrf.mxu0
        %v2462 = vadd.f32 0.0, %v2461
        %v2463 = vpop.f32.mrf.mxu0
        %2464 = vmatprep.mubr.bf16.mxu0 0
        %2465 = vmatmul.mubr.bf16.gmra.mxu0 %v2312
        %v2466 = vpop.f32.mrf.mxu0
        %v2467 = vadd.f32 0.0, %v2466
        %v2468 = vpop.f32.mrf.mxu0
        %v2469 = vpop.f32.mrf.mxu0
        %v2470 = vadd.f32 0.0, %v2469
        %v2471 = vpop.f32.mrf.mxu0
        %2472 = vmatprep.mubr.bf16.mxu0 0
        %2473 = vmatmul.mubr.bf16.gmra.mxu0 %v2315
        %v2474 = vpop.f32.mrf.mxu0
        %v2475 = vadd.f32 0.0, %v2474
        %v2476 = vpop.f32.mrf.mxu0
        %v2477 = vpop.f32.mrf.mxu0
        %v2478 = vadd.f32 0.0, %v2477
        %v2479 = vpop.f32.mrf.mxu0
        %2480 = vdwg.mxu0
        %v2481 = vadd.f32 %v2189, %v2355
        %v2482 = vadd.f32 %v2190, %v2358
        %v2483 = vadd.f32 %v2191, %v2363
        %v2484 = vadd.f32 %v2192, %v2366
        %v2485 = vadd.f32 %v2193, %v2371
        %v2486 = vadd.f32 %v2194, %v2374
        %v2487 = vadd.f32 %v2195, %v2379
        %v2488 = vadd.f32 %v2196, %v2382
        %v2489 = vadd.f32 %v2197, %v2387
        %v2490 = vadd.f32 %v2198, %v2390
        %v2491 = vadd.f32 %v2199, %v2395
        %v2492 = vadd.f32 %v2200, %v2398
        %v2493 = vadd.f32 %v2201, %v2403
        %v2494 = vadd.f32 %v2202, %v2406
        %v2495 = vadd.f32 %v2203, %v2411
        %v2496 = vadd.f32 %v2204, %v2414
        %v2497 = vadd.f32 %v2205, %v2419
        %v2498 = vadd.f32 %v2206, %v2422
        %v2499 = vadd.f32 %v2207, %v2427
        %v2500 = vadd.f32 %v2208, %v2430
        %v2501 = vadd.f32 %v2209, %v2435
        %v2502 = vadd.f32 %v2210, %v2438
        %v2503 = vadd.f32 %v2211, %v2443
        %v2504 = vadd.f32 %v2212, %v2446
        %v2505 = vadd.f32 %v2213, %v2451
        %v2506 = vadd.f32 %v2214, %v2454
        %v2507 = vadd.f32 %v2215, %v2459
        %v2508 = vadd.f32 %v2216, %v2462
        %v2509 = vadd.f32 %v2217, %v2467
        %v2510 = vadd.f32 %v2218, %v2470
        %v2511 = vadd.f32 %v2219, %v2475
        %v2512 = vadd.f32 %v2220, %v2478
        %v2513 = vld [vmem:[%s1928 + $0x2] sm:$0xff]
        %v2514 = vld [vmem:[%s1928 + $0xa] sm:$0xff]
        %v2515 = vld [vmem:[%s1928 + $0x1a] sm:$0xff]
        %v2516 = vld [vmem:[%s1928 + $0x22] sm:$0xff]
        %v2517 = vld [vmem:[%s1928 + $0x32] sm:$0xff]
        %v2518 = vld [vmem:[%s1928 + $0x3a] sm:$0xff]
        %v2519 = vld [vmem:[%s1928 + $0x4a] sm:$0xff]
        %v2520 = vld [vmem:[%s1928 + $0x52] sm:$0xff]
        %v2521 = vld [vmem:[%s1928 + $0x62] sm:$0xff]
        %v2522 = vld [vmem:[%s1928 + $0x6a] sm:$0xff]
        %v2523 = vld [vmem:[%s1928 + $0x7a] sm:$0xff]
        %v2524 = vld [vmem:[%s1928 + $0x82] sm:$0xff]
        %v2525 = vld [vmem:[%s1928 + $0x92] sm:$0xff]
        %v2526 = vld [vmem:[%s1928 + $0x9a] sm:$0xff]
        %v2527 = vld [vmem:[%s1928 + $0xaa] sm:$0xff]
        %v2528 = vld [vmem:[%s1928 + $0xb2] sm:$0xff]
        %v2529 = vld [vmem:[%s1928 + $0xc2] sm:$0xff]
        %v2530 = vld [vmem:[%s1928 + $0xca] sm:$0xff]
        %v2531 = vld [vmem:[%s1928 + $0xda] sm:$0xff]
        %v2532 = vld [vmem:[%s1928 + $0xe2] sm:$0xff]
        %v2533 = vld [vmem:[%s1928 + $0xf2] sm:$0xff]
        %v2534 = vld [vmem:[%s1928 + $0xfa] sm:$0xff]
        %v2535 = vld [vmem:[%s1928 + $0x10a] sm:$0xff]
        %v2536 = vld [vmem:[%s1928 + $0x112] sm:$0xff]
        %v2537 = vld [vmem:[%s1928 + $0x122] sm:$0xff]
        %v2538 = vld [vmem:[%s1928 + $0x12a] sm:$0xff]
        %v2539 = vld [vmem:[%s1928 + $0x13a] sm:$0xff]
        %v2540 = vld [vmem:[%s1928 + $0x142] sm:$0xff]
        %v2541 = vld [vmem:[%s1928 + $0x152] sm:$0xff]
        %v2542 = vld [vmem:[%s1928 + $0x15a] sm:$0xff]
        %v2543 = vld [vmem:[%s1928 + $0x16a] sm:$0xff]
        %v2544 = vld [vmem:[%s1928 + $0x172] sm:$0xff]
        %v2545 = vpack.c.bf16 %v2514, %v2513
        %v2546 = vpack.c.bf16 %v2516, %v2515
        %v2547 = vpack.c.bf16 %v2518, %v2517
        %v2548 = vpack.c.bf16 %v2520, %v2519
        %v2549 = vpack.c.bf16 %v2522, %v2521
        %v2550 = vpack.c.bf16 %v2524, %v2523
        %v2551 = vpack.c.bf16 %v2526, %v2525
        %v2552 = vpack.c.bf16 %v2528, %v2527
        %v2553 = vpack.c.bf16 %v2530, %v2529
        %v2554 = vpack.c.bf16 %v2532, %v2531
        %v2555 = vpack.c.bf16 %v2534, %v2533
        %v2556 = vpack.c.bf16 %v2536, %v2535
        %v2557 = vpack.c.bf16 %v2538, %v2537
        %v2558 = vpack.c.bf16 %v2540, %v2539
        %v2559 = vpack.c.bf16 %v2542, %v2541
        %v2560 = vpack.c.bf16 %v2544, %v2543
        %v2562 = vsel %vm329, %v2545, 0
        %v2565 = vsel %vm329, %v2546, 0
        %v2568 = vsel %vm329, %v2547, 0
        %v2571 = vsel %vm329, %v2548, 0
        %v2574 = vsel %vm329, %v2549, 0
        %v2577 = vsel %vm329, %v2550, 0
        %v2580 = vsel %vm329, %v2551, 0
        %v2583 = vsel %vm329, %v2552, 0
        %v2586 = vsel %vm329, %v2553, 0
        %v2589 = vsel %vm329, %v2554, 0
        %v2592 = vsel %vm329, %v2555, 0
        %v2595 = vsel %vm329, %v2556, 0
        %v2598 = vsel %vm329, %v2557, 0
        %v2601 = vsel %vm329, %v2558, 0
        %v2604 = vsel %vm329, %v2559, 0
        %v2607 = vsel %vm329, %v2560, 0
        %v2610 = vsel %vm378, %v229, 0
        %2612 = vmatprep.subr.bf16.mxu0 0
        %2613 = vmatpush1.bf16.msra.mxu0 0
        %2614 = vmatprep.subr.bf16.mxu0 0
        %2615 = vmatpush1.bf16.msra.mxu0 0
        %2616 = vmatprep.subr.bf16.mxu0 0
        %2617 = vmatpush1.bf16.msra.mxu0 0
        %2618 = vmatprep.subr.bf16.mxu0 0
        %2619 = vmatpush1.bf16.msra.mxu0 0
        %2620 = vmatprep.subr.bf16.mxu0 0
        %2621 = vmatpush1.bf16.msra.mxu0 0
        %2622 = vmatprep.subr.bf16.mxu0 0
        %2623 = vmatpush1.bf16.msra.mxu0 0
        %2624 = vmatprep.subr.bf16.mxu0 0
        %2625 = vmatpush1.bf16.msra.mxu0 0
        %2626 = vmatprep.subr.bf16.mxu0 0
        %2627 = vmatpush1.bf16.msra.mxu0 %v2610
        %2628 = vmatprep.subr.bf16.mxu0 0
        %2629 = vmatpush2.bf16.msra.mxu0 0
        %2630 = vmatprep.subr.bf16.mxu0 0
        %2631 = vmatpush2.bf16.msra.mxu0 0
        %2632 = vmatprep.subr.bf16.mxu0 0
        %2633 = vmatpush2.bf16.msra.mxu0 0
        %2634 = vmatprep.subr.bf16.mxu0 0
        %2635 = vmatpush2.bf16.msra.mxu0 0
        %2636 = vmatprep.subr.bf16.mxu0 0
        %2637 = vmatpush2.bf16.msra.mxu0 0
        %2638 = vmatprep.subr.bf16.mxu0 0
        %2639 = vmatpush2.bf16.msra.mxu0 0
        %2640 = vmatprep.subr.bf16.mxu0 0
        %2641 = vmatpush2.bf16.msra.mxu0 0
        %2642 = vmatprep.subr.bf16.mxu0 0
        %2643 = vmatpush2.bf16.msra.mxu0 0
        %2644 = vmatprep.mubr.bf16.mxu0 0
        %2645 = vmatmul.mubr.bf16.gmra.mxu0 %v2562
        %v2646 = vpop.f32.mrf.mxu0
        %v2647 = vadd.f32 0.0, %v2646
        %v2648 = vpop.f32.mrf.mxu0
        %v2649 = vpop.f32.mrf.mxu0
        %v2650 = vadd.f32 0.0, %v2649
        %v2651 = vpop.f32.mrf.mxu0
        %2652 = vmatprep.mubr.bf16.mxu0 0
        %2653 = vmatmul.mubr.bf16.gmra.mxu0 %v2565
        %v2654 = vpop.f32.mrf.mxu0
        %v2655 = vadd.f32 0.0, %v2654
        %v2656 = vpop.f32.mrf.mxu0
        %v2657 = vpop.f32.mrf.mxu0
        %v2658 = vadd.f32 0.0, %v2657
        %v2659 = vpop.f32.mrf.mxu0
        %2660 = vmatprep.mubr.bf16.mxu0 0
        %2661 = vmatmul.mubr.bf16.gmra.mxu0 %v2568
        %v2662 = vpop.f32.mrf.mxu0
        %v2663 = vadd.f32 0.0, %v2662
        %v2664 = vpop.f32.mrf.mxu0
        %v2665 = vpop.f32.mrf.mxu0
        %v2666 = vadd.f32 0.0, %v2665
        %v2667 = vpop.f32.mrf.mxu0
        %2668 = vmatprep.mubr.bf16.mxu0 0
        %2669 = vmatmul.mubr.bf16.gmra.mxu0 %v2571
        %v2670 = vpop.f32.mrf.mxu0
        %v2671 = vadd.f32 0.0, %v2670
        %v2672 = vpop.f32.mrf.mxu0
        %v2673 = vpop.f32.mrf.mxu0
        %v2674 = vadd.f32 0.0, %v2673
        %v2675 = vpop.f32.mrf.mxu0
        %2676 = vmatprep.mubr.bf16.mxu0 0
        %2677 = vmatmul.mubr.bf16.gmra.mxu0 %v2574
        %v2678 = vpop.f32.mrf.mxu0
        %v2679 = vadd.f32 0.0, %v2678
        %v2680 = vpop.f32.mrf.mxu0
        %v2681 = vpop.f32.mrf.mxu0
        %v2682 = vadd.f32 0.0, %v2681
        %v2683 = vpop.f32.mrf.mxu0
        %2684 = vmatprep.mubr.bf16.mxu0 0
        %2685 = vmatmul.mubr.bf16.gmra.mxu0 %v2577
        %v2686 = vpop.f32.mrf.mxu0
        %v2687 = vadd.f32 0.0, %v2686
        %v2688 = vpop.f32.mrf.mxu0
        %v2689 = vpop.f32.mrf.mxu0
        %v2690 = vadd.f32 0.0, %v2689
        %v2691 = vpop.f32.mrf.mxu0
        %2692 = vmatprep.mubr.bf16.mxu0 0
        %2693 = vmatmul.mubr.bf16.gmra.mxu0 %v2580
        %v2694 = vpop.f32.mrf.mxu0
        %v2695 = vadd.f32 0.0, %v2694
        %v2696 = vpop.f32.mrf.mxu0
        %v2697 = vpop.f32.mrf.mxu0
        %v2698 = vadd.f32 0.0, %v2697
        %v2699 = vpop.f32.mrf.mxu0
        %2700 = vmatprep.mubr.bf16.mxu0 0
        %2701 = vmatmul.mubr.bf16.gmra.mxu0 %v2583
        %v2702 = vpop.f32.mrf.mxu0
        %v2703 = vadd.f32 0.0, %v2702
        %v2704 = vpop.f32.mrf.mxu0
        %v2705 = vpop.f32.mrf.mxu0
        %v2706 = vadd.f32 0.0, %v2705
        %v2707 = vpop.f32.mrf.mxu0
        %2708 = vmatprep.mubr.bf16.mxu0 0
        %2709 = vmatmul.mubr.bf16.gmra.mxu0 %v2586
        %v2710 = vpop.f32.mrf.mxu0
        %v2711 = vadd.f32 0.0, %v2710
        %v2712 = vpop.f32.mrf.mxu0
        %v2713 = vpop.f32.mrf.mxu0
        %v2714 = vadd.f32 0.0, %v2713
        %v2715 = vpop.f32.mrf.mxu0
        %2716 = vmatprep.mubr.bf16.mxu0 0
        %2717 = vmatmul.mubr.bf16.gmra.mxu0 %v2589
        %v2718 = vpop.f32.mrf.mxu0
        %v2719 = vadd.f32 0.0, %v2718
        %v2720 = vpop.f32.mrf.mxu0
        %v2721 = vpop.f32.mrf.mxu0
        %v2722 = vadd.f32 0.0, %v2721
        %v2723 = vpop.f32.mrf.mxu0
        %2724 = vmatprep.mubr.bf16.mxu0 0
        %2725 = vmatmul.mubr.bf16.gmra.mxu0 %v2592
        %v2726 = vpop.f32.mrf.mxu0
        %v2727 = vadd.f32 0.0, %v2726
        %v2728 = vpop.f32.mrf.mxu0
        %v2729 = vpop.f32.mrf.mxu0
        %v2730 = vadd.f32 0.0, %v2729
        %v2731 = vpop.f32.mrf.mxu0
        %2732 = vmatprep.mubr.bf16.mxu0 0
        %2733 = vmatmul.mubr.bf16.gmra.mxu0 %v2595
        %v2734 = vpop.f32.mrf.mxu0
        %v2735 = vadd.f32 0.0, %v2734
        %v2736 = vpop.f32.mrf.mxu0
        %v2737 = vpop.f32.mrf.mxu0
        %v2738 = vadd.f32 0.0, %v2737
        %v2739 = vpop.f32.mrf.mxu0
        %2740 = vmatprep.mubr.bf16.mxu0 0
        %2741 = vmatmul.mubr.bf16.gmra.mxu0 %v2598
        %v2742 = vpop.f32.mrf.mxu0
        %v2743 = vadd.f32 0.0, %v2742
        %v2744 = vpop.f32.mrf.mxu0
        %v2745 = vpop.f32.mrf.mxu0
        %v2746 = vadd.f32 0.0, %v2745
        %v2747 = vpop.f32.mrf.mxu0
        %2748 = vmatprep.mubr.bf16.mxu0 0
        %2749 = vmatmul.mubr.bf16.gmra.mxu0 %v2601
        %v2750 = vpop.f32.mrf.mxu0
        %v2751 = vadd.f32 0.0, %v2750
        %v2752 = vpop.f32.mrf.mxu0
        %v2753 = vpop.f32.mrf.mxu0
        %v2754 = vadd.f32 0.0, %v2753
        %v2755 = vpop.f32.mrf.mxu0
        %2756 = vmatprep.mubr.bf16.mxu0 0
        %2757 = vmatmul.mubr.bf16.gmra.mxu0 %v2604
        %v2758 = vpop.f32.mrf.mxu0
        %v2759 = vadd.f32 0.0, %v2758
        %v2760 = vpop.f32.mrf.mxu0
        %v2761 = vpop.f32.mrf.mxu0
        %v2762 = vadd.f32 0.0, %v2761
        %v2763 = vpop.f32.mrf.mxu0
        %2764 = vmatprep.mubr.bf16.mxu0 0
        %2765 = vmatmul.mubr.bf16.gmra.mxu0 %v2607
        %v2766 = vpop.f32.mrf.mxu0
        %v2767 = vadd.f32 0.0, %v2766
        %v2768 = vpop.f32.mrf.mxu0
        %v2769 = vpop.f32.mrf.mxu0
        %v2770 = vadd.f32 0.0, %v2769
        %v2771 = vpop.f32.mrf.mxu0
        %2772 = vdwg.mxu0
        %v2773 = vadd.f32 %v2481, %v2647
        %v2774 = vadd.f32 %v2482, %v2650
        %v2775 = vadd.f32 %v2483, %v2655
        %v2776 = vadd.f32 %v2484, %v2658
        %v2777 = vadd.f32 %v2485, %v2663
        %v2778 = vadd.f32 %v2486, %v2666
        %v2779 = vadd.f32 %v2487, %v2671
        %v2780 = vadd.f32 %v2488, %v2674
        %v2781 = vadd.f32 %v2489, %v2679
        %v2782 = vadd.f32 %v2490, %v2682
        %v2783 = vadd.f32 %v2491, %v2687
        %v2784 = vadd.f32 %v2492, %v2690
        %v2785 = vadd.f32 %v2493, %v2695
        %v2786 = vadd.f32 %v2494, %v2698
        %v2787 = vadd.f32 %v2495, %v2703
        %v2788 = vadd.f32 %v2496, %v2706
        %v2789 = vadd.f32 %v2497, %v2711
        %v2790 = vadd.f32 %v2498, %v2714
        %v2791 = vadd.f32 %v2499, %v2719
        %v2792 = vadd.f32 %v2500, %v2722
        %v2793 = vadd.f32 %v2501, %v2727
        %v2794 = vadd.f32 %v2502, %v2730
        %v2795 = vadd.f32 %v2503, %v2735
        %v2796 = vadd.f32 %v2504, %v2738
        %v2797 = vadd.f32 %v2505, %v2743
        %v2798 = vadd.f32 %v2506, %v2746
        %v2799 = vadd.f32 %v2507, %v2751
        %v2800 = vadd.f32 %v2508, %v2754
        %v2801 = vadd.f32 %v2509, %v2759
        %v2802 = vadd.f32 %v2510, %v2762
        %v2803 = vadd.f32 %v2511, %v2767
        %v2804 = vadd.f32 %v2512, %v2770
        %2805 = vst [vmem:[%s177] sm:$0xff] %v2773
        %2806 = vst [vmem:[%s177 + $0x8] sm:$0xff] %v2774
        %2807 = vst [vmem:[%s177 + $0x10] sm:$0xff] %v2775
        %2808 = vst [vmem:[%s177 + $0x18] sm:$0xff] %v2776
        %2809 = vst [vmem:[%s177 + $0x20] sm:$0xff] %v2777
        %2810 = vst [vmem:[%s177 + $0x28] sm:$0xff] %v2778
        %2811 = vst [vmem:[%s177 + $0x30] sm:$0xff] %v2779
        %2812 = vst [vmem:[%s177 + $0x38] sm:$0xff] %v2780
        %2813 = vst [vmem:[%s177 + $0x40] sm:$0xff] %v2781
        %2814 = vst [vmem:[%s177 + $0x48] sm:$0xff] %v2782
        %2815 = vst [vmem:[%s177 + $0x50] sm:$0xff] %v2783
        %2816 = vst [vmem:[%s177 + $0x58] sm:$0xff] %v2784
        %2817 = vst [vmem:[%s177 + $0x60] sm:$0xff] %v2785
        %2818 = vst [vmem:[%s177 + $0x68] sm:$0xff] %v2786
        %2819 = vst [vmem:[%s177 + $0x70] sm:$0xff] %v2787
        %2820 = vst [vmem:[%s177 + $0x78] sm:$0xff] %v2788
        %2821 = vst [vmem:[%s177 + $0x80] sm:$0xff] %v2789
        %2822 = vst [vmem:[%s177 + $0x88] sm:$0xff] %v2790
        %2823 = vst [vmem:[%s177 + $0x90] sm:$0xff] %v2791
        %2824 = vst [vmem:[%s177 + $0x98] sm:$0xff] %v2792
        %2825 = vst [vmem:[%s177 + $0xa0] sm:$0xff] %v2793
        %2826 = vst [vmem:[%s177 + $0xa8] sm:$0xff] %v2794
        %2827 = vst [vmem:[%s177 + $0xb0] sm:$0xff] %v2795
        %2828 = vst [vmem:[%s177 + $0xb8] sm:$0xff] %v2796
        %2829 = vst [vmem:[%s177 + $0xc0] sm:$0xff] %v2797
        %2830 = vst [vmem:[%s177 + $0xc8] sm:$0xff] %v2798
        %2831 = vst [vmem:[%s177 + $0xd0] sm:$0xff] %v2799
        %2832 = vst [vmem:[%s177 + $0xd8] sm:$0xff] %v2800
        %2833 = vst [vmem:[%s177 + $0xe0] sm:$0xff] %v2801
        %2834 = vst [vmem:[%s177 + $0xe8] sm:$0xff] %v2802
        %2835 = vst [vmem:[%s177 + $0xf0] sm:$0xff] %v2803
        %2836 = vst [vmem:[%s177 + $0xf8] sm:$0xff] %v2804
        %s2837 = sand.u32 %s107, 1
        %s2838 = scalar_lea.sflag [#allocation3], %s2837
        %s2839 = sand.u32 %s107, 1
        %s2840 = smul.addr %s2839, 256
        %s2841 = scalar_lea.vmem [#allocation2], %s2840
        // Predicated region
        $region33: #{tpu_custom_call.1} parent=31 // pred_check
          %p2842 = pneg %p117
        $region34: #{tpu_custom_call.1} parent=31 // pred_check_branch
          %2844 = sbr.rel (%p2842) target = $region36
        $region35: #{tpu_custom_call.1} parent=31 // pred_region
          %s2845 = smul.u32 32, %s22
          %s2847 = ssub.s32 4096, 4096
          %2848 = vsyncadd %s2838, %s2847
          %s2849 = smul.addr %s21, 32
          %s2850 = sadd.s32 %s2845, %s2849
          %s2851 = smul.addr %s2850, 128
          %s2852 = scalar_lea.hbm %s3, %s2851
          %s2853 = sshll.u32 %s2841, 4
          %s2854 = int_to_ptr.vmem [resolvable:$true] %s2853
          %2859 = dma.vmem_to_hbm [thread:$0]  %s2854, 4096, %s2852, %s2838, 128, 128, 8
        $region36: #{tpu_custom_call.1} parent=31 // pred_fallthru
          _
      $region32: #{tpu_custom_call.1} parent=5 // pred_fallthru
        _
      %p2860 = scmp.le.s32.totalorder 2, %s12
      // Predicated region
      $region37: #{tpu_custom_call.1} parent=5 // pred_check
        %p2861 = pneg %p2860
      $region38: #{tpu_custom_call.1} parent=5 // pred_check_branch
        %2863 = sbr.rel (%p2861) target = $region40
      $region39: #{tpu_custom_call.1} parent=5 // pred_region
        %s2864 = ssub.s32 %s12, 2
        // Predicated region
        $region41: #{tpu_custom_call.1} parent=39 // pred_check
          %p2865 = pneg %p123
        $region42: #{tpu_custom_call.1} parent=39 // pred_check_branch
          %2867 = sbr.rel (%p2865) target = $region44
        $region43: #{tpu_custom_call.1} parent=39 // pred_region
          %s2868 = sand.u32 %s108, 1
          %s2869 = scalar_lea.sflag [#allocation3], %s2868
          %s2870 = sand.u32 %s108, 1
          %s2871 = smul.addr %s2870, 256
          %s2872 = scalar_lea.vmem [#allocation2], %s2871
          %2873 = dma.done %s2869, 4096
        $region44: #{tpu_custom_call.1} parent=39 // pred_fallthru
          _
      $region40: #{tpu_custom_call.1} parent=5 // pred_fallthru
        _
    $region6: #{tpu_custom_call.1} parent=1 // loop_footer
      %s16 = sadd.s32 1, %s12
    $region7: #{tpu_custom_call.1} parent=1 // loop_footer_branch
      %11 = sbr.rel target = $region3
    $region8: #{tpu_custom_call.1} parent=1 // loop_exit
      _
    %2874 = vsyncpa [#allocation3], 1
    %s2875 = scalar_lea.sflag [#allocation3], 1
    %2876 = vsyncpa %s2875, 1

</llo_original>
